<compile_context>
chip_gen: v6e
topology: v6e:2x2x1
jax: 0.10.0
libtpu: 0.0.40
codegen_flags: <defaults>
</compile_context>

<pallas_src>
import functools

import jax
import jax.numpy as jnp
from jax.experimental import pallas as pl
from jax.experimental.pallas import tpu as pltpu


def _cdiv(a, b):
    return -(-a // b)


def _round_up(a, b):
    return _cdiv(a, b) * b


# ----------------------------------------------------------------------------- kernel
def _grud_kernel(seq_ref, emp_ref, wdxd_ref, bdx_ref, wbig_ref, bcomb_ref, bdh_ref,
                 w4_ref, bhhn_ref, wc_ref, bc_ref,
                 hid_ref, pred_ref, logp_ref,
                 h_scr, gi_scr, gamh_scr,
                 *, n_valid_steps, mask_padded_steps):
    B, H = h_scr.shape
    Tb = gi_scr.shape[0] // B
    F = bdx_ref.shape[1]
    j = pl.program_id(0)

    # init hidden state at the first time chunk
    @pl.when(j == 0)
    def _():
        h_scr[...] = jnp.zeros_like(h_scr)

    seq = seq_ref[...]                 # (Tb*B, 4F), columns: [m | d | x | x_LOCF]
    m = seq[:, 0 * F:1 * F]
    d = seq[:, 1 * F:2 * F]
    x = seq[:, 2 * F:3 * F]
    xl = seq[:, 3 * F:4 * F]

    # ---- hoisted, h-independent work for the whole chunk (batched over Tb*B rows) ----
    # TemporalDecay (features, diag=True): elementwise against diag(Wdx).
    gamma_x = jnp.exp(-jax.nn.relu(d * wdxd_ref[...] + bdx_ref[...]))
    x_h = gamma_x * xl + (1.0 - gamma_x) * emp_ref[...]
    x_rep = m * x + (1.0 - m) * x_h

    # single fused matmul: [x_rep | m | d] @ [[Wix,0],[Wim,0],[0,Wdh^T]]  -> (Tb*B, 4H)
    a = jnp.concatenate([x_rep, seq[:, 0:2 * F]], axis=1)        # (Tb*B, 3F)
    proj = jnp.dot(a, wbig_ref[...], preferred_element_type=jnp.float32)
    gi_scr[...] = proj[:, 0:3 * H] + bcomb_ref[...]              # b_hh[r,z] folded in
    gamh_scr[...] = jnp.exp(-jax.nn.relu(proj[:, 3 * H:4 * H] + bdh_ref[...]))

    w4 = w4_ref[...]        # (H, 4H): [Wih_hr+W_hhr | Wih_hz+W_hhz | Wih_hn | W_hhn]
    bhhn = bhhn_ref[...]    # (1, H)

    # ---- serial recurrence: only h-dependent work per step ----
    def step(tt, h):
        r0 = pl.multiple_of(tt * B, 8)
        gam_h = gamh_scr[pl.ds(r0, B), :]       # (B, H)
        gi = gi_scr[pl.ds(r0, B), :]            # (B, 3H)
        hd = h * gam_h                          # decayed hidden state
        hp = jnp.dot(hd, w4, preferred_element_type=jnp.float32)   # (B, 4H)
        rz = jax.nn.sigmoid(gi[:, 0:2 * H] + hp[:, 0:2 * H])        # merged r/z sigmoid
        r = rz[:, 0:H]
        z = rz[:, H:2 * H]
        n = jnp.tanh(gi[:, 2 * H:3 * H] + hp[:, 2 * H:3 * H]
                     + r * (hp[:, 3 * H:4 * H] + bhhn))
        h_new = (1.0 - z) * n + z * hd
        if mask_padded_steps:
            valid = ((j * Tb + tt) < n_valid_steps).astype(h.dtype)
            h_new = valid * h_new + (1.0 - valid) * h
        return h_new

    h = jax.lax.fori_loop(0, Tb, step, h_scr[...], unroll=(Tb <= 16))
    h_scr[...] = h

    # ---- classifier + (log-)softmax only at the very last chunk ----
    @pl.when(j == pl.num_programs(0) - 1)
    def _():
        logits = jnp.dot(h, wc_ref[...], preferred_element_type=jnp.float32) + bc_ref[...]
        shifted = logits - jnp.max(logits, axis=1, keepdims=True)
        e = jnp.exp(shifted)
        s = jnp.sum(e, axis=1, keepdims=True)
        hid_ref[...] = h
        pred_ref[...] = e / s
        logp_ref[...] = shifted - jnp.log(s)     # stable log-softmax for the NLL loss


# ----------------------------------------------------------------------------- wrapper
def grud_forward(params, X, missing_mask, deltas, empirical_mean, X_filledLOCF,
                 label=None, training=True, target_rows=512, time_block_cap=64):
    """JAX wrapper mirroring _GRUD.forward (inputs are batch-major (B, T, F))."""
    B, T, F = X.shape
    H = params["W4_T"].shape[0]
    C = params["Wc_T"].shape[1]

    B_pad = _round_up(B, 8)                                   # sublane multiple
    Tb = max(1, min(T, time_block_cap, _cdiv(target_rows, B_pad)))
    T_pad = _round_up(T, Tb)
    nblk = T_pad // Tb

    # Combined time-major sequence stream [m | d | x | x_LOCF]: one DMA stream with
    # 4F-wide rows instead of four/five F-wide streams.
    seq = jnp.concatenate([missing_mask, deltas, X, X_filledLOCF], axis=2)   # (B,T,4F)
    seq = jnp.transpose(seq, (1, 0, 2))                                      # (T,B,4F)
    if T_pad != T or B_pad != B:
        seq = jnp.pad(seq, ((0, T_pad - T), (0, B_pad - B), (0, 0)))
    seq = seq.reshape(T_pad * B_pad, 4 * F)

    emp = empirical_mean
    if B_pad != B:
        emp = jnp.pad(emp, ((0, B_pad - B), (0, 0)))
    emp_tiled = jnp.tile(emp, (Tb, 1))        # (Tb*B_pad, F): constant across chunks

    kernel = functools.partial(_grud_kernel, n_valid_steps=T,
                               mask_padded_steps=(T_pad != T))

    seq_spec = pl.BlockSpec((Tb * B_pad, 4 * F), lambda j: (j, 0))
    full = lambda shape: pl.BlockSpec(shape, lambda j: (0,) * len(shape))

    hidden, pred, logp = pl.pallas_call(
        kernel,
        out_shape=(
            jax.ShapeDtypeStruct((B_pad, H), jnp.float32),
            jax.ShapeDtypeStruct((B_pad, C), jnp.float32),
            jax.ShapeDtypeStruct((B_pad, C), jnp.float32),
        ),
        grid_spec=pltpu.PrefetchScalarGridSpec(
            num_scalar_prefetch=0,
            grid=(nblk,),
            in_specs=[
                seq_spec,                                  # combined sequence stream
                full((Tb * B_pad, F)),                     # empirical mean (chunk-tiled const)
                full((1, F)), full((1, F)),                # diag(Wdx), bdx
                full((3 * F, 4 * H)),                      # fused [Wih_x|Wih_m|Wdh] block weight
                full((1, 3 * H)), full((1, H)),            # combined gi bias, bdh
                full((H, 4 * H)), full((1, H)),            # fused hidden weight, b_hn
                full((H, C)), full((1, C)),                # classifier W^T, b
            ],
            out_specs=[
                pl.BlockSpec((B_pad, H), lambda j: (0, 0)),
                pl.BlockSpec((B_pad, C), lambda j: (0, 0)),
                pl.BlockSpec((B_pad, C), lambda j: (0, 0)),
            ],
            scratch_shapes=[
                pltpu.VMEM((B_pad, H), jnp.float32),              # hidden state carry
                pltpu.VMEM((Tb * B_pad, 3 * H), jnp.float32),     # hoisted gi
                pltpu.VMEM((Tb * B_pad, H), jnp.float32),         # hoisted gamma_h
            ],
        ),
        compiler_params=pltpu.CompilerParams(
            dimension_semantics=("arbitrary",),
            vmem_limit_bytes=32 * 1024 * 1024),
    )(
        seq, emp_tiled,
        params["Wdx_diag"], params["bdx"],
        params["Wbig"], params["b_comb"], params["bdh"],
        params["W4_T"], params["b_hhn"],
        params["Wc_T"], params["bc"],
    )

    hidden = hidden[:B]
    pred = pred[:B]
    logp = logp[:B]

    results = {"classification_pred": pred}
    if training:
        # F.nll_loss(log(softmax(logits)), label) == -mean(logp[arange(B), label])
        results["loss"] = -jnp.mean(logp[jnp.arange(B), label])
    return results, hidden


# ----------------------------------------------------------------------------- params
def _pack_params(raw):
    """Repack PyTorch-shaped GRU-D parameters into the kernel's fused layout."""
    Wdh, bdh, Wdx, bdx = raw["Wdh"], raw["bdh"], raw["Wdx"], raw["bdx"]
    W_ih, W_hh, b_ih, b_hh = raw["W_ih"], raw["W_hh"], raw["b_ih"], raw["b_hh"]
    Wc, bc = raw["Wc"], raw["bc"]
    H, F = Wdh.shape

    Wih_x = W_ih[:, 0:F]            # (3H, F)
    Wih_h = W_ih[:, F:F + H]        # (3H, H)
    Wih_m = W_ih[:, F + H:]         # (3H, F)

    Wih_hr, Wih_hz, Wih_hn = Wih_h[0:H], Wih_h[H:2 * H], Wih_h[2 * H:3 * H]
    W_hhr, W_hhz, W_hhn = W_hh[0:H], W_hh[H:2 * H], W_hh[2 * H:3 * H]

    # fused hidden-side weight: r/z gates' ih+hh weights pre-summed (exact rewrite);
    # n gate keeps the ih and hh parts separate because of the r * (...) factor.
    W4_T = jnp.concatenate(
        [(Wih_hr + W_hhr).T, (Wih_hz + W_hhz).T, Wih_hn.T, W_hhn.T], axis=1)   # (H, 4H)

    # combined input-side bias: b_ih plus b_hh for r/z; b_hn stays separate.
    b_comb = (b_ih + jnp.concatenate([b_hh[0:2 * H],
                                      jnp.zeros((H,), jnp.float32)]))[None, :]

    # fused block-structured input weight (3F, 4H): rows [x_rep | m | d] ->
    # cols [gi (3H) | gamma_h pre-activation (H)].
    ZH = jnp.zeros((F, H), jnp.float32)
    Z3H = jnp.zeros((F, 3 * H), jnp.float32)
    Wbig = jnp.concatenate([
        jnp.concatenate([Wih_x.T, ZH], axis=1),
        jnp.concatenate([Wih_m.T, ZH], axis=1),
        jnp.concatenate([Z3H, Wdh.T], axis=1),
    ], axis=0)                                                                  # (3F, 4H)

    return {
        "Wdx_diag": jnp.diag(Wdx)[None, :], "bdx": bdx[None, :],
        "Wbig": Wbig, "b_comb": b_comb, "bdh": bdh[None, :],
        "W4_T": W4_T, "b_hhn": b_hh[2 * H:3 * H][None, :],
        "Wc_T": Wc.T, "bc": bc[None, :],
    }


def init_raw_params(key, n_features, rnn_hidden_size, n_classes):
    """Deterministic synthetic parameters matching the PyTorch module's shapes."""
    F, H, C = n_features, rnn_hidden_size, n_classes
    ks = jax.random.split(key, 10)
    u = lambda k, shape, fan: jax.random.uniform(
        k, shape, jnp.float32, -1.0 / jnp.sqrt(fan), 1.0 / jnp.sqrt(fan))

    Wdh = u(ks[0], (H, F), F)                                  # TemporalDecay (hidden)
    bdh = u(ks[1], (H,), F)
    Wdx = u(ks[2], (F, F), F) * jnp.eye(F, dtype=jnp.float32)  # TemporalDecay (diag)
    bdx = u(ks[3], (F,), F)
    in_dim = 2 * F + H                                         # GRUCell input [x_rep,h,m]
    W_ih = u(ks[4], (3 * H, in_dim), H)
    W_hh = u(ks[5], (3 * H, H), H)
    b_ih = u(ks[6], (3 * H,), H)
    b_hh = u(ks[7], (3 * H,), H)
    Wc = u(ks[8], (C, H), H)                                   # classifier Linear(H, C)
    bc = u(ks[9], (C,), H)
    return {"Wdh": Wdh, "bdh": bdh, "Wdx": Wdx, "bdx": bdx,
            "W_ih": W_ih, "W_hh": W_hh, "b_ih": b_ih, "b_hh": b_hh,
            "Wc": Wc, "bc": bc}


# ----------------------------------------------------------------------------- reference
def grud_reference(raw, X, missing_mask, deltas, empirical_mean, X_filledLOCF, label):
    """Pure-JAX mirror of the PyTorch _GRUD forward (for parity checking)."""
    Wdh, bdh, Wdx, bdx = raw["Wdh"], raw["bdh"], raw["Wdx"], raw["bdx"]
    W_ih, W_hh, b_ih, b_hh = raw["W_ih"], raw["W_hh"], raw["b_ih"], raw["b_hh"]
    Wc, bc = raw["Wc"], raw["bc"]
    B, T, F = X.shape
    H = Wdh.shape[0]
    Wdx_masked = Wdx * jnp.eye(F, dtype=jnp.float32)
    h = jnp.zeros((B, H), jnp.float32)
    for t in range(T):
        x, d, m, xl = X[:, t], deltas[:, t], missing_mask[:, t], X_filledLOCF[:, t]
        gamma_h = jnp.exp(-jax.nn.relu(d @ Wdh.T + bdh))
        gamma_x = jnp.exp(-jax.nn.relu(d @ Wdx_masked.T + bdx))
        h = h * gamma_h
        x_h = gamma_x * xl + (1.0 - gamma_x) * empirical_mean
        x_rep = m * x + (1.0 - m) * x_h
        inp = jnp.concatenate([x_rep, h, m], axis=1)
        gi = inp @ W_ih.T + b_ih
        gh = h @ W_hh.T + b_hh
        r = jax.nn.sigmoid(gi[:, 0:H] + gh[:, 0:H])
        z = jax.nn.sigmoid(gi[:, H:2 * H] + gh[:, H:2 * H])
        n = jnp.tanh(gi[:, 2 * H:3 * H] + r * gh[:, 2 * H:3 * H])
        h = (1.0 - z) * n + z * h
    logits = h @ Wc.T + bc
    pred = jax.nn.softmax(logits, axis=1)
    loss = -jnp.mean(jnp.log(pred)[jnp.arange(B), label])
    return pred, loss, h


# ----------------------------------------------------------------------------- demo
if __name__ == "__main__":
    n_steps, n_features, rnn_hidden_size, n_classes = 8, 16, 32, 4
    batch = 8

    key = jax.random.PRNGKey(0)
    k_p, k_x, k_m, k_d, k_lbl = jax.random.split(key, 5)

    raw = init_raw_params(k_p, n_features, rnn_hidden_size, n_classes)
    params = _pack_params(raw)

    X = jax.random.normal(k_x, (batch, n_steps, n_features), jnp.float32)
    missing_mask = (jax.random.uniform(k_m, (batch, n_steps, n_features)) > 0.3).astype(jnp.float32)
    deltas = jnp.abs(jax.random.normal(k_d, (batch, n_steps, n_features), jnp.float32))
    X_masked = X * missing_mask              # missing entries zeroed (as in pypots)
    X_filledLOCF = X_masked                  # synthetic LOCF-filled values
    emp_vec = jnp.sum(X_masked, axis=(0, 1)) / jnp.maximum(
        jnp.sum(missing_mask, axis=(0, 1)), 1.0)
    empirical_mean = jnp.broadcast_to(emp_vec[None, :], (batch, n_features))
    label = jax.random.randint(k_lbl, (batch,), 0, n_classes)

    fwd = jax.jit(functools.partial(grud_forward, training=True))
    results, hidden = fwd(params, X_masked, missing_mask, deltas,
                          empirical_mean, X_filledLOCF, label=label)
    jax.block_until_ready(results["classification_pred"])
    jax.block_until_ready(results["loss"])
    jax.block_until_ready(hidden)

    ref_pred, ref_loss, ref_hidden = grud_reference(
        raw, X_masked, missing_mask, deltas, empirical_mean, X_filledLOCF, label)

    assert results["classification_pred"].shape == (batch, n_classes)
    assert hidden.shape == (batch, rnn_hidden_size)
    assert bool(jnp.isfinite(results["loss"]))
    assert bool(jnp.allclose(hidden, ref_hidden, rtol=1e-4, atol=1e-4))
    assert bool(jnp.allclose(results["classification_pred"], ref_pred, rtol=1e-4, atol=1e-4))
    assert bool(jnp.allclose(results["loss"], ref_loss, rtol=1e-4, atol=1e-4))
    print("KERNEL_OK")
</pallas_src>

<mosaic_0001>
module attributes {stable_mosaic.version = 11 : i64} {
  func.func @_grud_kernel(%arg0: i32, %arg1: memref<64x64xf32, #tpu.memory_space<vmem>>, %arg2: memref<64x16xf32, #tpu.memory_space<vmem>>, %arg3: memref<1x16xf32, #tpu.memory_space<vmem>>, %arg4: memref<1x16xf32, #tpu.memory_space<vmem>>, %arg5: memref<48x128xf32, #tpu.memory_space<vmem>>, %arg6: memref<1x96xf32, #tpu.memory_space<vmem>>, %arg7: memref<1x32xf32, #tpu.memory_space<vmem>>, %arg8: memref<32x128xf32, #tpu.memory_space<vmem>>, %arg9: memref<1x32xf32, #tpu.memory_space<vmem>>, %arg10: memref<32x4xf32, #tpu.memory_space<vmem>>, %arg11: memref<1x4xf32, #tpu.memory_space<vmem>>, %arg12: memref<8x32xf32, #tpu.memory_space<vmem>>, %arg13: memref<8x4xf32, #tpu.memory_space<vmem>>, %arg14: memref<8x4xf32, #tpu.memory_space<vmem>>, %arg15: memref<8x32xf32, #tpu.memory_space<vmem>>, %arg16: memref<64x96xf32, #tpu.memory_space<vmem>>, %arg17: memref<64x32xf32, #tpu.memory_space<vmem>>) attributes {dimension_semantics = [#tpu.dimension_semantics<arbitrary>], iteration_bounds = array<i64: 1>, scalar_prefetch = 0 : i64, scratch_operands = 3 : i64, tpu.core_type = #tpu.core_type<tc>, window_params = [{transform_indices = @transform_0, window_bounds = array<i64: 64, 64>}, {pipeline_mode = #tpu.pipeline_mode<synchronous>, transform_indices = @transform_1, window_bounds = array<i64: 64, 16>}, {pipeline_mode = #tpu.pipeline_mode<synchronous>, transform_indices = @transform_2, window_bounds = array<i64: 1, 16>}, {pipeline_mode = #tpu.pipeline_mode<synchronous>, transform_indices = @transform_3, window_bounds = array<i64: 1, 16>}, {pipeline_mode = #tpu.pipeline_mode<synchronous>, transform_indices = @transform_4, window_bounds = array<i64: 48, 128>}, {pipeline_mode = #tpu.pipeline_mode<synchronous>, transform_indices = @transform_5, window_bounds = array<i64: 1, 96>}, {pipeline_mode = #tpu.pipeline_mode<synchronous>, transform_indices = @transform_6, window_bounds = array<i64: 1, 32>}, {pipeline_mode = #tpu.pipeline_mode<synchronous>, transform_indices = @transform_7, window_bounds = array<i64: 32, 128>}, {pipeline_mode = #tpu.pipeline_mode<synchronous>, transform_indices = @transform_8, window_bounds = array<i64: 1, 32>}, {pipeline_mode = #tpu.pipeline_mode<synchronous>, transform_indices = @transform_9, window_bounds = array<i64: 32, 4>}, {pipeline_mode = #tpu.pipeline_mode<synchronous>, transform_indices = @transform_10, window_bounds = array<i64: 1, 4>}, {pipeline_mode = #tpu.pipeline_mode<synchronous>, transform_indices = @transform_11, window_bounds = array<i64: 8, 32>}, {pipeline_mode = #tpu.pipeline_mode<synchronous>, transform_indices = @transform_12, window_bounds = array<i64: 8, 4>}, {pipeline_mode = #tpu.pipeline_mode<synchronous>, transform_indices = @transform_13, window_bounds = array<i64: 8, 4>}]} {
    %c0_i32 = arith.constant 0 : i32
    %0 = arith.cmpi eq, %arg0, %c0_i32 : i32
    %1 = arith.extui %0 : i1 to i32
    %c0_i32_0 = arith.constant 0 : i32
    %2 = arith.cmpi ne, %1, %c0_i32_0 : i32
    scf.if %2 {
      %cst_83 = arith.constant 0.000000e+00 : f32
      %312 = vector.broadcast %cst_83 : f32 to vector<8x32xf32>
      %c0_84 = arith.constant 0 : index
      %c0_85 = arith.constant 0 : index
      %313 = vector.load %arg15[%c0_84, %c0_85] : memref<8x32xf32, #tpu.memory_space<vmem>>, vector<8x32xf32>
      tpu.vector_store %arg15[%c0_84, %c0_85], %312 {strides = array<i32>} : memref<8x32xf32, #tpu.memory_space<vmem>>, vector<8x32xf32>,
    } else {
    }
    %c0 = arith.constant 0 : index
    %c0_1 = arith.constant 0 : index
    %3 = vector.load %arg1[%c0, %c0_1] : memref<64x64xf32, #tpu.memory_space<vmem>>, vector<64x64xf32>
    %4 = vector.extract_strided_slice %3 {offsets = [0, 0], sizes = [64, 16], strides = [1, 1]} : vector<64x64xf32> to vector<64x16xf32>
    %5 = vector.extract_strided_slice %3 {offsets = [0, 16], sizes = [64, 16], strides = [1, 1]} : vector<64x64xf32> to vector<64x16xf32>
    %6 = vector.extract_strided_slice %3 {offsets = [0, 32], sizes = [64, 16], strides = [1, 1]} : vector<64x64xf32> to vector<64x16xf32>
    %7 = vector.extract_strided_slice %3 {offsets = [0, 48], sizes = [64, 16], strides = [1, 1]} : vector<64x64xf32> to vector<64x16xf32>
    %c0_2 = arith.constant 0 : index
    %c0_3 = arith.constant 0 : index
    %8 = vector.load %arg3[%c0_2, %c0_3] : memref<1x16xf32, #tpu.memory_space<vmem>>, vector<1x16xf32>
    %9 = vector.broadcast %8 : vector<1x16xf32> to vector<64x16xf32>
    %10 = arith.mulf %5, %9 : vector<64x16xf32>
    %c0_4 = arith.constant 0 : index
    %c0_5 = arith.constant 0 : index
    %11 = vector.load %arg4[%c0_4, %c0_5] : memref<1x16xf32, #tpu.memory_space<vmem>>, vector<1x16xf32>
    %12 = vector.broadcast %11 : vector<1x16xf32> to vector<64x16xf32>
    %13 = arith.addf %10, %12 : vector<64x16xf32>
    %cst = arith.constant 0.000000e+00 : f32
    %14 = vector.broadcast %cst : f32 to vector<64x16xf32>
    %15 = arith.maximumf %13, %14 : vector<64x16xf32>
    %cst_6 = arith.constant 0.000000e+00 : f32
    %16 = vector.broadcast %cst_6 : f32 to vector<64x16xf32>
    %17 = arith.subf %16, %15 : vector<64x16xf32>
    %18 = math.exp %17 : vector<64x16xf32>
    %19 = arith.mulf %18, %7 : vector<64x16xf32>
    %cst_7 = arith.constant 1.000000e+00 : f32
    %20 = vector.broadcast %cst_7 : f32 to vector<64x16xf32>
    %21 = arith.subf %20, %18 : vector<64x16xf32>
    %c0_8 = arith.constant 0 : index
    %c0_9 = arith.constant 0 : index
    %22 = vector.load %arg2[%c0_8, %c0_9] : memref<64x16xf32, #tpu.memory_space<vmem>>, vector<64x16xf32>
    %23 = arith.mulf %21, %22 : vector<64x16xf32>
    %24 = arith.addf %19, %23 : vector<64x16xf32>
    %25 = arith.mulf %4, %6 : vector<64x16xf32>
    %cst_10 = arith.constant 1.000000e+00 : f32
    %26 = vector.broadcast %cst_10 : f32 to vector<64x16xf32>
    %27 = arith.subf %26, %4 : vector<64x16xf32>
    %28 = arith.mulf %27, %24 : vector<64x16xf32>
    %29 = arith.addf %25, %28 : vector<64x16xf32>
    %30 = vector.extract_strided_slice %3 {offsets = [0, 0], sizes = [64, 32], strides = [1, 1]} : vector<64x64xf32> to vector<64x32xf32>
    %31 = tpu.concatenate %29, %30 in 1 : vector<64x16xf32>, vector<64x32xf32> -> vector<64x48xf32>
    %c0_11 = arith.constant 0 : index
    %c0_12 = arith.constant 0 : index
    %32 = vector.load %arg5[%c0_11, %c0_12] : memref<48x128xf32, #tpu.memory_space<vmem>>, vector<48x128xf32>
    %cst_13 = arith.constant dense<0.000000e+00> : vector<64x128xf32>
    %33 = tpu.matmul %31, %32, %cst_13 {dimension_numbers = #tpu.dot_dimension_numbers<[1], [0], [0], [1], [0, 0, 1, 1], [], []>} : vector<64x48xf32>, vector<48x128xf32>, vector<64x128xf32> -> vector<64x128xf32>
    %34 = vector.extract_strided_slice %33 {offsets = [0, 0], sizes = [64, 96], strides = [1, 1]} : vector<64x128xf32> to vector<64x96xf32>
    %c0_14 = arith.constant 0 : index
    %c0_15 = arith.constant 0 : index
    %35 = vector.load %arg6[%c0_14, %c0_15] : memref<1x96xf32, #tpu.memory_space<vmem>>, vector<1x96xf32>
    %36 = vector.broadcast %35 : vector<1x96xf32> to vector<64x96xf32>
    %37 = arith.addf %34, %36 : vector<64x96xf32>
    %c0_16 = arith.constant 0 : index
    %c0_17 = arith.constant 0 : index
    %38 = vector.load %arg16[%c0_16, %c0_17] : memref<64x96xf32, #tpu.memory_space<vmem>>, vector<64x96xf32>
    tpu.vector_store %arg16[%c0_16, %c0_17], %37 {strides = array<i32>} : memref<64x96xf32, #tpu.memory_space<vmem>>, vector<64x96xf32>,
    %39 = vector.extract_strided_slice %33 {offsets = [0, 96], sizes = [64, 32], strides = [1, 1]} : vector<64x128xf32> to vector<64x32xf32>
    %c0_18 = arith.constant 0 : index
    %c0_19 = arith.constant 0 : index
    %40 = vector.load %arg7[%c0_18, %c0_19] : memref<1x32xf32, #tpu.memory_space<vmem>>, vector<1x32xf32>
    %41 = vector.broadcast %40 : vector<1x32xf32> to vector<64x32xf32>
    %42 = arith.addf %39, %41 : vector<64x32xf32>
    %cst_20 = arith.constant 0.000000e+00 : f32
    %43 = vector.broadcast %cst_20 : f32 to vector<64x32xf32>
    %44 = arith.maximumf %42, %43 : vector<64x32xf32>
    %cst_21 = arith.constant 0.000000e+00 : f32
    %45 = vector.broadcast %cst_21 : f32 to vector<64x32xf32>
    %46 = arith.subf %45, %44 : vector<64x32xf32>
    %47 = math.exp %46 : vector<64x32xf32>
    %c0_22 = arith.constant 0 : index
    %c0_23 = arith.constant 0 : index
    %48 = vector.load %arg17[%c0_22, %c0_23] : memref<64x32xf32, #tpu.memory_space<vmem>>, vector<64x32xf32>
    tpu.vector_store %arg17[%c0_22, %c0_23], %47 {strides = array<i32>} : memref<64x32xf32, #tpu.memory_space<vmem>>, vector<64x32xf32>,
    %c0_24 = arith.constant 0 : index
    %c0_25 = arith.constant 0 : index
    %49 = vector.load %arg8[%c0_24, %c0_25] : memref<32x128xf32, #tpu.memory_space<vmem>>, vector<32x128xf32>
    %c0_26 = arith.constant 0 : index
    %c0_27 = arith.constant 0 : index
    %50 = vector.load %arg9[%c0_26, %c0_27] : memref<1x32xf32, #tpu.memory_space<vmem>>, vector<1x32xf32>
    %c0_28 = arith.constant 0 : index
    %c0_29 = arith.constant 0 : index
    %51 = vector.load %arg15[%c0_28, %c0_29] : memref<8x32xf32, #tpu.memory_space<vmem>>, vector<8x32xf32>
    %c0_i32_30 = arith.constant 0 : i32
    %c8_i32 = arith.constant 8 : i32
    %52 = arith.muli %c0_i32_30, %c8_i32 : i32
    %53 = tpu.assume_multiple %52, 8 : i32
    %54 = arith.index_cast %53 : i32 to index
    %c0_31 = arith.constant 0 : index
    %55 = vector.load %arg17[%54, %c0_31] : memref<64x32xf32, #tpu.memory_space<vmem>>, vector<8x32xf32>
    %56 = arith.index_cast %53 : i32 to index
    %c0_32 = arith.constant 0 : index
    %57 = vector.load %arg16[%56, %c0_32] : memref<64x96xf32, #tpu.memory_space<vmem>>, vector<8x96xf32>
    %58 = arith.mulf %51, %55 : vector<8x32xf32>
    %cst_33 = arith.constant dense<0.000000e+00> : vector<8x128xf32>
    %59 = tpu.matmul %58, %49, %cst_33 {dimension_numbers = #tpu.dot_dimension_numbers<[1], [0], [0], [1], [0, 0, 1, 1], [], []>} : vector<8x32xf32>, vector<32x128xf32>, vector<8x128xf32> -> vector<8x128xf32>
    %60 = vector.extract_strided_slice %57 {offsets = [0, 0], sizes = [8, 64], strides = [1, 1]} : vector<8x96xf32> to vector<8x64xf32>
    %61 = vector.extract_strided_slice %59 {offsets = [0, 0], sizes = [8, 64], strides = [1, 1]} : vector<8x128xf32> to vector<8x64xf32>
    %62 = arith.addf %60, %61 : vector<8x64xf32>
    %63 = arith.negf %62 : vector<8x64xf32>
    %64 = math.exp %63 : vector<8x64xf32>
    %cst_34 = arith.constant 1.000000e+00 : f32
    %65 = vector.broadcast %cst_34 : f32 to vector<8x64xf32>
    %66 = arith.addf %65, %64 : vector<8x64xf32>
    %67 = arith.divf %65, %66 : vector<8x64xf32>
    %68 = vector.extract_strided_slice %67 {offsets = [0, 0], sizes = [8, 32], strides = [1, 1]} : vector<8x64xf32> to vector<8x32xf32>
    %69 = vector.extract_strided_slice %67 {offsets = [0, 32], sizes = [8, 32], strides = [1, 1]} : vector<8x64xf32> to vector<8x32xf32>
    %70 = vector.extract_strided_slice %57 {offsets = [0, 64], sizes = [8, 32], strides = [1, 1]} : vector<8x96xf32> to vector<8x32xf32>
    %71 = vector.extract_strided_slice %59 {offsets = [0, 64], sizes = [8, 32], strides = [1, 1]} : vector<8x128xf32> to vector<8x32xf32>
    %72 = arith.addf %70, %71 : vector<8x32xf32>
    %73 = vector.extract_strided_slice %59 {offsets = [0, 96], sizes = [8, 32], strides = [1, 1]} : vector<8x128xf32> to vector<8x32xf32>
    %74 = vector.broadcast %50 : vector<1x32xf32> to vector<8x32xf32>
    %75 = arith.addf %73, %74 : vector<8x32xf32>
    %76 = arith.mulf %68, %75 : vector<8x32xf32>
    %77 = arith.addf %72, %76 : vector<8x32xf32>
    %78 = math.tanh %77 : vector<8x32xf32>
    %cst_35 = arith.constant 1.000000e+00 : f32
    %79 = vector.broadcast %cst_35 : f32 to vector<8x32xf32>
    %80 = arith.subf %79, %69 : vector<8x32xf32>
    %81 = arith.mulf %80, %78 : vector<8x32xf32>
    %82 = arith.mulf %69, %58 : vector<8x32xf32>
    %83 = arith.addf %81, %82 : vector<8x32xf32>
    %c1_i32 = arith.constant 1 : i32
    %c8_i32_36 = arith.constant 8 : i32
    %84 = arith.muli %c1_i32, %c8_i32_36 : i32
    %85 = tpu.assume_multiple %84, 8 : i32
    %86 = arith.index_cast %85 : i32 to index
    %c0_37 = arith.constant 0 : index
    %87 = vector.load %arg17[%86, %c0_37] : memref<64x32xf32, #tpu.memory_space<vmem>>, vector<8x32xf32>
    %88 = arith.index_cast %85 : i32 to index
    %c0_38 = arith.constant 0 : index
    %89 = vector.load %arg16[%88, %c0_38] : memref<64x96xf32, #tpu.memory_space<vmem>>, vector<8x96xf32>
    %90 = arith.mulf %83, %87 : vector<8x32xf32>
    %cst_39 = arith.constant dense<0.000000e+00> : vector<8x128xf32>
    %91 = tpu.matmul %90, %49, %cst_39 {dimension_numbers = #tpu.dot_dimension_numbers<[1], [0], [0], [1], [0, 0, 1, 1], [], []>} : vector<8x32xf32>, vector<32x128xf32>, vector<8x128xf32> -> vector<8x128xf32>
    %92 = vector.extract_strided_slice %89 {offsets = [0, 0], sizes = [8, 64], strides = [1, 1]} : vector<8x96xf32> to vector<8x64xf32>
    %93 = vector.extract_strided_slice %91 {offsets = [0, 0], sizes = [8, 64], strides = [1, 1]} : vector<8x128xf32> to vector<8x64xf32>
    %94 = arith.addf %92, %93 : vector<8x64xf32>
    %95 = arith.negf %94 : vector<8x64xf32>
    %96 = math.exp %95 : vector<8x64xf32>
    %cst_40 = arith.constant 1.000000e+00 : f32
    %97 = vector.broadcast %cst_40 : f32 to vector<8x64xf32>
    %98 = arith.addf %97, %96 : vector<8x64xf32>
    %99 = arith.divf %97, %98 : vector<8x64xf32>
    %100 = vector.extract_strided_slice %99 {offsets = [0, 0], sizes = [8, 32], strides = [1, 1]} : vector<8x64xf32> to vector<8x32xf32>
    %101 = vector.extract_strided_slice %99 {offsets = [0, 32], sizes = [8, 32], strides = [1, 1]} : vector<8x64xf32> to vector<8x32xf32>
    %102 = vector.extract_strided_slice %89 {offsets = [0, 64], sizes = [8, 32], strides = [1, 1]} : vector<8x96xf32> to vector<8x32xf32>
    %103 = vector.extract_strided_slice %91 {offsets = [0, 64], sizes = [8, 32], strides = [1, 1]} : vector<8x128xf32> to vector<8x32xf32>
    %104 = arith.addf %102, %103 : vector<8x32xf32>
    %105 = vector.extract_strided_slice %91 {offsets = [0, 96], sizes = [8, 32], strides = [1, 1]} : vector<8x128xf32> to vector<8x32xf32>
    %106 = vector.broadcast %50 : vector<1x32xf32> to vector<8x32xf32>
    %107 = arith.addf %105, %106 : vector<8x32xf32>
    %108 = arith.mulf %100, %107 : vector<8x32xf32>
    %109 = arith.addf %104, %108 : vector<8x32xf32>
    %110 = math.tanh %109 : vector<8x32xf32>
    %cst_41 = arith.constant 1.000000e+00 : f32
    %111 = vector.broadcast %cst_41 : f32 to vector<8x32xf32>
    %112 = arith.subf %111, %101 : vector<8x32xf32>
    %113 = arith.mulf %112, %110 : vector<8x32xf32>
    %114 = arith.mulf %101, %90 : vector<8x32xf32>
    %115 = arith.addf %113, %114 : vector<8x32xf32>
    %c2_i32 = arith.constant 2 : i32
    %c8_i32_42 = arith.constant 8 : i32
    %116 = arith.muli %c2_i32, %c8_i32_42 : i32
    %117 = tpu.assume_multiple %116, 8 : i32
    %118 = arith.index_cast %117 : i32 to index
    %c0_43 = arith.constant 0 : index
    %119 = vector.load %arg17[%118, %c0_43] : memref<64x32xf32, #tpu.memory_space<vmem>>, vector<8x32xf32>
    %120 = arith.index_cast %117 : i32 to index
    %c0_44 = arith.constant 0 : index
    %121 = vector.load %arg16[%120, %c0_44] : memref<64x96xf32, #tpu.memory_space<vmem>>, vector<8x96xf32>
    %122 = arith.mulf %115, %119 : vector<8x32xf32>
    %cst_45 = arith.constant dense<0.000000e+00> : vector<8x128xf32>
    %123 = tpu.matmul %122, %49, %cst_45 {dimension_numbers = #tpu.dot_dimension_numbers<[1], [0], [0], [1], [0, 0, 1, 1], [], []>} : vector<8x32xf32>, vector<32x128xf32>, vector<8x128xf32> -> vector<8x128xf32>
    %124 = vector.extract_strided_slice %121 {offsets = [0, 0], sizes = [8, 64], strides = [1, 1]} : vector<8x96xf32> to vector<8x64xf32>
    %125 = vector.extract_strided_slice %123 {offsets = [0, 0], sizes = [8, 64], strides = [1, 1]} : vector<8x128xf32> to vector<8x64xf32>
    %126 = arith.addf %124, %125 : vector<8x64xf32>
    %127 = arith.negf %126 : vector<8x64xf32>
    %128 = math.exp %127 : vector<8x64xf32>
    %cst_46 = arith.constant 1.000000e+00 : f32
    %129 = vector.broadcast %cst_46 : f32 to vector<8x64xf32>
    %130 = arith.addf %129, %128 : vector<8x64xf32>
    %131 = arith.divf %129, %130 : vector<8x64xf32>
    %132 = vector.extract_strided_slice %131 {offsets = [0, 0], sizes = [8, 32], strides = [1, 1]} : vector<8x64xf32> to vector<8x32xf32>
    %133 = vector.extract_strided_slice %131 {offsets = [0, 32], sizes = [8, 32], strides = [1, 1]} : vector<8x64xf32> to vector<8x32xf32>
    %134 = vector.extract_strided_slice %121 {offsets = [0, 64], sizes = [8, 32], strides = [1, 1]} : vector<8x96xf32> to vector<8x32xf32>
    %135 = vector.extract_strided_slice %123 {offsets = [0, 64], sizes = [8, 32], strides = [1, 1]} : vector<8x128xf32> to vector<8x32xf32>
    %136 = arith.addf %134, %135 : vector<8x32xf32>
    %137 = vector.extract_strided_slice %123 {offsets = [0, 96], sizes = [8, 32], strides = [1, 1]} : vector<8x128xf32> to vector<8x32xf32>
    %138 = vector.broadcast %50 : vector<1x32xf32> to vector<8x32xf32>
    %139 = arith.addf %137, %138 : vector<8x32xf32>
    %140 = arith.mulf %132, %139 : vector<8x32xf32>
    %141 = arith.addf %136, %140 : vector<8x32xf32>
    %142 = math.tanh %141 : vector<8x32xf32>
    %cst_47 = arith.constant 1.000000e+00 : f32
    %143 = vector.broadcast %cst_47 : f32 to vector<8x32xf32>
    %144 = arith.subf %143, %133 : vector<8x32xf32>
    %145 = arith.mulf %144, %142 : vector<8x32xf32>
    %146 = arith.mulf %133, %122 : vector<8x32xf32>
    %147 = arith.addf %145, %146 : vector<8x32xf32>
    %c3_i32 = arith.constant 3 : i32
    %c8_i32_48 = arith.constant 8 : i32
    %148 = arith.muli %c3_i32, %c8_i32_48 : i32
    %149 = tpu.assume_multiple %148, 8 : i32
    %150 = arith.index_cast %149 : i32 to index
    %c0_49 = arith.constant 0 : index
    %151 = vector.load %arg17[%150, %c0_49] : memref<64x32xf32, #tpu.memory_space<vmem>>, vector<8x32xf32>
    %152 = arith.index_cast %149 : i32 to index
    %c0_50 = arith.constant 0 : index
    %153 = vector.load %arg16[%152, %c0_50] : memref<64x96xf32, #tpu.memory_space<vmem>>, vector<8x96xf32>
    %154 = arith.mulf %147, %151 : vector<8x32xf32>
    %cst_51 = arith.constant dense<0.000000e+00> : vector<8x128xf32>
    %155 = tpu.matmul %154, %49, %cst_51 {dimension_numbers = #tpu.dot_dimension_numbers<[1], [0], [0], [1], [0, 0, 1, 1], [], []>} : vector<8x32xf32>, vector<32x128xf32>, vector<8x128xf32> -> vector<8x128xf32>
    %156 = vector.extract_strided_slice %153 {offsets = [0, 0], sizes = [8, 64], strides = [1, 1]} : vector<8x96xf32> to vector<8x64xf32>
    %157 = vector.extract_strided_slice %155 {offsets = [0, 0], sizes = [8, 64], strides = [1, 1]} : vector<8x128xf32> to vector<8x64xf32>
    %158 = arith.addf %156, %157 : vector<8x64xf32>
    %159 = arith.negf %158 : vector<8x64xf32>
    %160 = math.exp %159 : vector<8x64xf32>
    %cst_52 = arith.constant 1.000000e+00 : f32
    %161 = vector.broadcast %cst_52 : f32 to vector<8x64xf32>
    %162 = arith.addf %161, %160 : vector<8x64xf32>
    %163 = arith.divf %161, %162 : vector<8x64xf32>
    %164 = vector.extract_strided_slice %163 {offsets = [0, 0], sizes = [8, 32], strides = [1, 1]} : vector<8x64xf32> to vector<8x32xf32>
    %165 = vector.extract_strided_slice %163 {offsets = [0, 32], sizes = [8, 32], strides = [1, 1]} : vector<8x64xf32> to vector<8x32xf32>
    %166 = vector.extract_strided_slice %153 {offsets = [0, 64], sizes = [8, 32], strides = [1, 1]} : vector<8x96xf32> to vector<8x32xf32>
    %167 = vector.extract_strided_slice %155 {offsets = [0, 64], sizes = [8, 32], strides = [1, 1]} : vector<8x128xf32> to vector<8x32xf32>
    %168 = arith.addf %166, %167 : vector<8x32xf32>
    %169 = vector.extract_strided_slice %155 {offsets = [0, 96], sizes = [8, 32], strides = [1, 1]} : vector<8x128xf32> to vector<8x32xf32>
    %170 = vector.broadcast %50 : vector<1x32xf32> to vector<8x32xf32>
    %171 = arith.addf %169, %170 : vector<8x32xf32>
    %172 = arith.mulf %164, %171 : vector<8x32xf32>
    %173 = arith.addf %168, %172 : vector<8x32xf32>
    %174 = math.tanh %173 : vector<8x32xf32>
    %cst_53 = arith.constant 1.000000e+00 : f32
    %175 = vector.broadcast %cst_53 : f32 to vector<8x32xf32>
    %176 = arith.subf %175, %165 : vector<8x32xf32>
    %177 = arith.mulf %176, %174 : vector<8x32xf32>
    %178 = arith.mulf %165, %154 : vector<8x32xf32>
    %179 = arith.addf %177, %178 : vector<8x32xf32>
    %c4_i32 = arith.constant 4 : i32
    %c8_i32_54 = arith.constant 8 : i32
    %180 = arith.muli %c4_i32, %c8_i32_54 : i32
    %181 = tpu.assume_multiple %180, 8 : i32
    %182 = arith.index_cast %181 : i32 to index
    %c0_55 = arith.constant 0 : index
    %183 = vector.load %arg17[%182, %c0_55] : memref<64x32xf32, #tpu.memory_space<vmem>>, vector<8x32xf32>
    %184 = arith.index_cast %181 : i32 to index
    %c0_56 = arith.constant 0 : index
    %185 = vector.load %arg16[%184, %c0_56] : memref<64x96xf32, #tpu.memory_space<vmem>>, vector<8x96xf32>
    %186 = arith.mulf %179, %183 : vector<8x32xf32>
    %cst_57 = arith.constant dense<0.000000e+00> : vector<8x128xf32>
    %187 = tpu.matmul %186, %49, %cst_57 {dimension_numbers = #tpu.dot_dimension_numbers<[1], [0], [0], [1], [0, 0, 1, 1], [], []>} : vector<8x32xf32>, vector<32x128xf32>, vector<8x128xf32> -> vector<8x128xf32>
    %188 = vector.extract_strided_slice %185 {offsets = [0, 0], sizes = [8, 64], strides = [1, 1]} : vector<8x96xf32> to vector<8x64xf32>
    %189 = vector.extract_strided_slice %187 {offsets = [0, 0], sizes = [8, 64], strides = [1, 1]} : vector<8x128xf32> to vector<8x64xf32>
    %190 = arith.addf %188, %189 : vector<8x64xf32>
    %191 = arith.negf %190 : vector<8x64xf32>
    %192 = math.exp %191 : vector<8x64xf32>
    %cst_58 = arith.constant 1.000000e+00 : f32
    %193 = vector.broadcast %cst_58 : f32 to vector<8x64xf32>
    %194 = arith.addf %193, %192 : vector<8x64xf32>
    %195 = arith.divf %193, %194 : vector<8x64xf32>
    %196 = vector.extract_strided_slice %195 {offsets = [0, 0], sizes = [8, 32], strides = [1, 1]} : vector<8x64xf32> to vector<8x32xf32>
    %197 = vector.extract_strided_slice %195 {offsets = [0, 32], sizes = [8, 32], strides = [1, 1]} : vector<8x64xf32> to vector<8x32xf32>
    %198 = vector.extract_strided_slice %185 {offsets = [0, 64], sizes = [8, 32], strides = [1, 1]} : vector<8x96xf32> to vector<8x32xf32>
    %199 = vector.extract_strided_slice %187 {offsets = [0, 64], sizes = [8, 32], strides = [1, 1]} : vector<8x128xf32> to vector<8x32xf32>
    %200 = arith.addf %198, %199 : vector<8x32xf32>
    %201 = vector.extract_strided_slice %187 {offsets = [0, 96], sizes = [8, 32], strides = [1, 1]} : vector<8x128xf32> to vector<8x32xf32>
    %202 = vector.broadcast %50 : vector<1x32xf32> to vector<8x32xf32>
    %203 = arith.addf %201, %202 : vector<8x32xf32>
    %204 = arith.mulf %196, %203 : vector<8x32xf32>
    %205 = arith.addf %200, %204 : vector<8x32xf32>
    %206 = math.tanh %205 : vector<8x32xf32>
    %cst_59 = arith.constant 1.000000e+00 : f32
    %207 = vector.broadcast %cst_59 : f32 to vector<8x32xf32>
    %208 = arith.subf %207, %197 : vector<8x32xf32>
    %209 = arith.mulf %208, %206 : vector<8x32xf32>
    %210 = arith.mulf %197, %186 : vector<8x32xf32>
    %211 = arith.addf %209, %210 : vector<8x32xf32>
    %c5_i32 = arith.constant 5 : i32
    %c8_i32_60 = arith.constant 8 : i32
    %212 = arith.muli %c5_i32, %c8_i32_60 : i32
    %213 = tpu.assume_multiple %212, 8 : i32
    %214 = arith.index_cast %213 : i32 to index
    %c0_61 = arith.constant 0 : index
    %215 = vector.load %arg17[%214, %c0_61] : memref<64x32xf32, #tpu.memory_space<vmem>>, vector<8x32xf32>
    %216 = arith.index_cast %213 : i32 to index
    %c0_62 = arith.constant 0 : index
    %217 = vector.load %arg16[%216, %c0_62] : memref<64x96xf32, #tpu.memory_space<vmem>>, vector<8x96xf32>
    %218 = arith.mulf %211, %215 : vector<8x32xf32>
    %cst_63 = arith.constant dense<0.000000e+00> : vector<8x128xf32>
    %219 = tpu.matmul %218, %49, %cst_63 {dimension_numbers = #tpu.dot_dimension_numbers<[1], [0], [0], [1], [0, 0, 1, 1], [], []>} : vector<8x32xf32>, vector<32x128xf32>, vector<8x128xf32> -> vector<8x128xf32>
    %220 = vector.extract_strided_slice %217 {offsets = [0, 0], sizes = [8, 64], strides = [1, 1]} : vector<8x96xf32> to vector<8x64xf32>
    %221 = vector.extract_strided_slice %219 {offsets = [0, 0], sizes = [8, 64], strides = [1, 1]} : vector<8x128xf32> to vector<8x64xf32>
    %222 = arith.addf %220, %221 : vector<8x64xf32>
    %223 = arith.negf %222 : vector<8x64xf32>
    %224 = math.exp %223 : vector<8x64xf32>
    %cst_64 = arith.constant 1.000000e+00 : f32
    %225 = vector.broadcast %cst_64 : f32 to vector<8x64xf32>
    %226 = arith.addf %225, %224 : vector<8x64xf32>
    %227 = arith.divf %225, %226 : vector<8x64xf32>
    %228 = vector.extract_strided_slice %227 {offsets = [0, 0], sizes = [8, 32], strides = [1, 1]} : vector<8x64xf32> to vector<8x32xf32>
    %229 = vector.extract_strided_slice %227 {offsets = [0, 32], sizes = [8, 32], strides = [1, 1]} : vector<8x64xf32> to vector<8x32xf32>
    %230 = vector.extract_strided_slice %217 {offsets = [0, 64], sizes = [8, 32], strides = [1, 1]} : vector<8x96xf32> to vector<8x32xf32>
    %231 = vector.extract_strided_slice %219 {offsets = [0, 64], sizes = [8, 32], strides = [1, 1]} : vector<8x128xf32> to vector<8x32xf32>
    %232 = arith.addf %230, %231 : vector<8x32xf32>
    %233 = vector.extract_strided_slice %219 {offsets = [0, 96], sizes = [8, 32], strides = [1, 1]} : vector<8x128xf32> to vector<8x32xf32>
    %234 = vector.broadcast %50 : vector<1x32xf32> to vector<8x32xf32>
    %235 = arith.addf %233, %234 : vector<8x32xf32>
    %236 = arith.mulf %228, %235 : vector<8x32xf32>
    %237 = arith.addf %232, %236 : vector<8x32xf32>
    %238 = math.tanh %237 : vector<8x32xf32>
    %cst_65 = arith.constant 1.000000e+00 : f32
    %239 = vector.broadcast %cst_65 : f32 to vector<8x32xf32>
    %240 = arith.subf %239, %229 : vector<8x32xf32>
    %241 = arith.mulf %240, %238 : vector<8x32xf32>
    %242 = arith.mulf %229, %218 : vector<8x32xf32>
    %243 = arith.addf %241, %242 : vector<8x32xf32>
    %c6_i32 = arith.constant 6 : i32
    %c8_i32_66 = arith.constant 8 : i32
    %244 = arith.muli %c6_i32, %c8_i32_66 : i32
    %245 = tpu.assume_multiple %244, 8 : i32
    %246 = arith.index_cast %245 : i32 to index
    %c0_67 = arith.constant 0 : index
    %247 = vector.load %arg17[%246, %c0_67] : memref<64x32xf32, #tpu.memory_space<vmem>>, vector<8x32xf32>
    %248 = arith.index_cast %245 : i32 to index
    %c0_68 = arith.constant 0 : index
    %249 = vector.load %arg16[%248, %c0_68] : memref<64x96xf32, #tpu.memory_space<vmem>>, vector<8x96xf32>
    %250 = arith.mulf %243, %247 : vector<8x32xf32>
    %cst_69 = arith.constant dense<0.000000e+00> : vector<8x128xf32>
    %251 = tpu.matmul %250, %49, %cst_69 {dimension_numbers = #tpu.dot_dimension_numbers<[1], [0], [0], [1], [0, 0, 1, 1], [], []>} : vector<8x32xf32>, vector<32x128xf32>, vector<8x128xf32> -> vector<8x128xf32>
    %252 = vector.extract_strided_slice %249 {offsets = [0, 0], sizes = [8, 64], strides = [1, 1]} : vector<8x96xf32> to vector<8x64xf32>
    %253 = vector.extract_strided_slice %251 {offsets = [0, 0], sizes = [8, 64], strides = [1, 1]} : vector<8x128xf32> to vector<8x64xf32>
    %254 = arith.addf %252, %253 : vector<8x64xf32>
    %255 = arith.negf %254 : vector<8x64xf32>
    %256 = math.exp %255 : vector<8x64xf32>
    %cst_70 = arith.constant 1.000000e+00 : f32
    %257 = vector.broadcast %cst_70 : f32 to vector<8x64xf32>
    %258 = arith.addf %257, %256 : vector<8x64xf32>
    %259 = arith.divf %257, %258 : vector<8x64xf32>
    %260 = vector.extract_strided_slice %259 {offsets = [0, 0], sizes = [8, 32], strides = [1, 1]} : vector<8x64xf32> to vector<8x32xf32>
    %261 = vector.extract_strided_slice %259 {offsets = [0, 32], sizes = [8, 32], strides = [1, 1]} : vector<8x64xf32> to vector<8x32xf32>
    %262 = vector.extract_strided_slice %249 {offsets = [0, 64], sizes = [8, 32], strides = [1, 1]} : vector<8x96xf32> to vector<8x32xf32>
    %263 = vector.extract_strided_slice %251 {offsets = [0, 64], sizes = [8, 32], strides = [1, 1]} : vector<8x128xf32> to vector<8x32xf32>
    %264 = arith.addf %262, %263 : vector<8x32xf32>
    %265 = vector.extract_strided_slice %251 {offsets = [0, 96], sizes = [8, 32], strides = [1, 1]} : vector<8x128xf32> to vector<8x32xf32>
    %266 = vector.broadcast %50 : vector<1x32xf32> to vector<8x32xf32>
    %267 = arith.addf %265, %266 : vector<8x32xf32>
    %268 = arith.mulf %260, %267 : vector<8x32xf32>
    %269 = arith.addf %264, %268 : vector<8x32xf32>
    %270 = math.tanh %269 : vector<8x32xf32>
    %cst_71 = arith.constant 1.000000e+00 : f32
    %271 = vector.broadcast %cst_71 : f32 to vector<8x32xf32>
    %272 = arith.subf %271, %261 : vector<8x32xf32>
    %273 = arith.mulf %272, %270 : vector<8x32xf32>
    %274 = arith.mulf %261, %250 : vector<8x32xf32>
    %275 = arith.addf %273, %274 : vector<8x32xf32>
    %c7_i32 = arith.constant 7 : i32
    %c8_i32_72 = arith.constant 8 : i32
    %276 = arith.muli %c7_i32, %c8_i32_72 : i32
    %277 = tpu.assume_multiple %276, 8 : i32
    %278 = arith.index_cast %277 : i32 to index
    %c0_73 = arith.constant 0 : index
    %279 = vector.load %arg17[%278, %c0_73] : memref<64x32xf32, #tpu.memory_space<vmem>>, vector<8x32xf32>
    %280 = arith.index_cast %277 : i32 to index
    %c0_74 = arith.constant 0 : index
    %281 = vector.load %arg16[%280, %c0_74] : memref<64x96xf32, #tpu.memory_space<vmem>>, vector<8x96xf32>
    %282 = arith.mulf %275, %279 : vector<8x32xf32>
    %cst_75 = arith.constant dense<0.000000e+00> : vector<8x128xf32>
    %283 = tpu.matmul %282, %49, %cst_75 {dimension_numbers = #tpu.dot_dimension_numbers<[1], [0], [0], [1], [0, 0, 1, 1], [], []>} : vector<8x32xf32>, vector<32x128xf32>, vector<8x128xf32> -> vector<8x128xf32>
    %284 = vector.extract_strided_slice %281 {offsets = [0, 0], sizes = [8, 64], strides = [1, 1]} : vector<8x96xf32> to vector<8x64xf32>
    %285 = vector.extract_strided_slice %283 {offsets = [0, 0], sizes = [8, 64], strides = [1, 1]} : vector<8x128xf32> to vector<8x64xf32>
    %286 = arith.addf %284, %285 : vector<8x64xf32>
    %287 = arith.negf %286 : vector<8x64xf32>
    %288 = math.exp %287 : vector<8x64xf32>
    %cst_76 = arith.constant 1.000000e+00 : f32
    %289 = vector.broadcast %cst_76 : f32 to vector<8x64xf32>
    %290 = arith.addf %289, %288 : vector<8x64xf32>
    %291 = arith.divf %289, %290 : vector<8x64xf32>
    %292 = vector.extract_strided_slice %291 {offsets = [0, 0], sizes = [8, 32], strides = [1, 1]} : vector<8x64xf32> to vector<8x32xf32>
    %293 = vector.extract_strided_slice %291 {offsets = [0, 32], sizes = [8, 32], strides = [1, 1]} : vector<8x64xf32> to vector<8x32xf32>
    %294 = vector.extract_strided_slice %281 {offsets = [0, 64], sizes = [8, 32], strides = [1, 1]} : vector<8x96xf32> to vector<8x32xf32>
    %295 = vector.extract_strided_slice %283 {offsets = [0, 64], sizes = [8, 32], strides = [1, 1]} : vector<8x128xf32> to vector<8x32xf32>
    %296 = arith.addf %294, %295 : vector<8x32xf32>
    %297 = vector.extract_strided_slice %283 {offsets = [0, 96], sizes = [8, 32], strides = [1, 1]} : vector<8x128xf32> to vector<8x32xf32>
    %298 = vector.broadcast %50 : vector<1x32xf32> to vector<8x32xf32>
    %299 = arith.addf %297, %298 : vector<8x32xf32>
    %300 = arith.mulf %292, %299 : vector<8x32xf32>
    %301 = arith.addf %296, %300 : vector<8x32xf32>
    %302 = math.tanh %301 : vector<8x32xf32>
    %cst_77 = arith.constant 1.000000e+00 : f32
    %303 = vector.broadcast %cst_77 : f32 to vector<8x32xf32>
    %304 = arith.subf %303, %293 : vector<8x32xf32>
    %305 = arith.mulf %304, %302 : vector<8x32xf32>
    %306 = arith.mulf %293, %282 : vector<8x32xf32>
    %307 = arith.addf %305, %306 : vector<8x32xf32>
    %c8_i32_78 = arith.constant 8 : i32
    %c0_79 = arith.constant 0 : index
    %c0_80 = arith.constant 0 : index
    %308 = vector.load %arg15[%c0_79, %c0_80] : memref<8x32xf32, #tpu.memory_space<vmem>>, vector<8x32xf32>
    tpu.vector_store %arg15[%c0_79, %c0_80], %307 {strides = array<i32>} : memref<8x32xf32, #tpu.memory_space<vmem>>, vector<8x32xf32>,
    %c0_i32_81 = arith.constant 0 : i32
    %309 = arith.cmpi eq, %arg0, %c0_i32_81 : i32
    %310 = arith.extui %309 : i1 to i32
    %c0_i32_82 = arith.constant 0 : i32
    %311 = arith.cmpi ne, %310, %c0_i32_82 : i32
    scf.if %311 {
      %c0_83 = arith.constant 0 : index
      %c0_84 = arith.constant 0 : index
      %312 = vector.load %arg10[%c0_83, %c0_84] : memref<32x4xf32, #tpu.memory_space<vmem>>, vector<32x4xf32>
      %cst_85 = arith.constant dense<0.000000e+00> : vector<8x4xf32>
      %313 = tpu.matmul %307, %312, %cst_85 {dimension_numbers = #tpu.dot_dimension_numbers<[1], [0], [0], [1], [0, 0, 1, 1], [], []>} : vector<8x32xf32>, vector<32x4xf32>, vector<8x4xf32> -> vector<8x4xf32>
      %c0_86 = arith.constant 0 : index
      %c0_87 = arith.constant 0 : index
      %314 = vector.load %arg11[%c0_86, %c0_87] : memref<1x4xf32, #tpu.memory_space<vmem>>, vector<1x4xf32>
      %315 = vector.broadcast %314 : vector<1x4xf32> to vector<8x4xf32>
      %316 = arith.addf %313, %315 : vector<8x4xf32>
      %cst_88 = arith.constant dense<0xFF800000> : vector<8xf32>
      %317 = vector.multi_reduction <maximumf>, %316, %cst_88 [1] : vector<8x4xf32> to vector<8xf32>
      %318 = vector.shape_cast %317 : vector<8xf32> to vector<8x1xf32>
      %319 = vector.broadcast %318 : vector<8x1xf32> to vector<8x4xf32>
      %320 = arith.subf %316, %319 : vector<8x4xf32>
      %321 = math.exp %320 : vector<8x4xf32>
      %cst_89 = arith.constant dense<0.000000e+00> : vector<8xf32>
      %322 = vector.multi_reduction <add>, %321, %cst_89 [1] : vector<8x4xf32> to vector<8xf32>
      %323 = vector.shape_cast %322 : vector<8xf32> to vector<8x1xf32>
      %c0_90 = arith.constant 0 : index
      %c0_91 = arith.constant 0 : index
      %324 = vector.load %arg12[%c0_90, %c0_91] : memref<8x32xf32, #tpu.memory_space<vmem>>, vector<8x32xf32>
      tpu.vector_store %arg12[%c0_90, %c0_91], %307 {strides = array<i32>} : memref<8x32xf32, #tpu.memory_space<vmem>>, vector<8x32xf32>,
      %325 = vector.broadcast %323 : vector<8x1xf32> to vector<8x4xf32>
      %326 = arith.divf %321, %325 : vector<8x4xf32>
      %c0_92 = arith.constant 0 : index
      %c0_93 = arith.constant 0 : index
      %327 = vector.load %arg13[%c0_92, %c0_93] : memref<8x4xf32, #tpu.memory_space<vmem>>, vector<8x4xf32>
      tpu.vector_store %arg13[%c0_92, %c0_93], %326 {strides = array<i32>} : memref<8x4xf32, #tpu.memory_space<vmem>>, vector<8x4xf32>,
      %328 = math.log %323 : vector<8x1xf32>
      %329 = vector.broadcast %328 : vector<8x1xf32> to vector<8x4xf32>
      %330 = arith.subf %320, %329 : vector<8x4xf32>
      %c0_94 = arith.constant 0 : index
      %c0_95 = arith.constant 0 : index
      %331 = vector.load %arg14[%c0_94, %c0_95] : memref<8x4xf32, #tpu.memory_space<vmem>>, vector<8x4xf32>
      tpu.vector_store %arg14[%c0_94, %c0_95], %330 {strides = array<i32>} : memref<8x4xf32, #tpu.memory_space<vmem>>, vector<8x4xf32>,
    } else {
    }
    return
  }
  func.func @transform_0(%arg0: i32) -> (i32, i32) {
    %c0_i32 = arith.constant 0 : i32
    %c0_i32_0 = arith.constant 0 : i32
    return %arg0, %c0_i32 : i32, i32
  }
  func.func @transform_1(%arg0: i32) -> (i32, i32) {
    %c0_i32 = arith.constant 0 : i32
    %c0_i32_0 = arith.constant 0 : i32
    %c0_i32_1 = arith.constant 0 : i32
    return %c0_i32, %c0_i32_0 : i32, i32
  }
  func.func @transform_2(%arg0: i32) -> (i32, i32) {
    %c0_i32 = arith.constant 0 : i32
    %c0_i32_0 = arith.constant 0 : i32
    %c0_i32_1 = arith.constant 0 : i32
    return %c0_i32, %c0_i32_0 : i32, i32
  }
  func.func @transform_3(%arg0: i32) -> (i32, i32) {
    %c0_i32 = arith.constant 0 : i32
    %c0_i32_0 = arith.constant 0 : i32
    %c0_i32_1 = arith.constant 0 : i32
    return %c0_i32, %c0_i32_0 : i32, i32
  }
  func.func @transform_4(%arg0: i32) -> (i32, i32) {
    %c0_i32 = arith.constant 0 : i32
    %c0_i32_0 = arith.constant 0 : i32
    %c0_i32_1 = arith.constant 0 : i32
    return %c0_i32, %c0_i32_0 : i32, i32
  }
  func.func @transform_5(%arg0: i32) -> (i32, i32) {
    %c0_i32 = arith.constant 0 : i32
    %c0_i32_0 = arith.constant 0 : i32
    %c0_i32_1 = arith.constant 0 : i32
    return %c0_i32, %c0_i32_0 : i32, i32
  }
  func.func @transform_6(%arg0: i32) -> (i32, i32) {
    %c0_i32 = arith.constant 0 : i32
    %c0_i32_0 = arith.constant 0 : i32
    %c0_i32_1 = arith.constant 0 : i32
    return %c0_i32, %c0_i32_0 : i32, i32
  }
  func.func @transform_7(%arg0: i32) -> (i32, i32) {
    %c0_i32 = arith.constant 0 : i32
    %c0_i32_0 = arith.constant 0 : i32
    %c0_i32_1 = arith.constant 0 : i32
    return %c0_i32, %c0_i32_0 : i32, i32
  }
  func.func @transform_8(%arg0: i32) -> (i32, i32) {
    %c0_i32 = arith.constant 0 : i32
    %c0_i32_0 = arith.constant 0 : i32
    %c0_i32_1 = arith.constant 0 : i32
    return %c0_i32, %c0_i32_0 : i32, i32
  }
  func.func @transform_9(%arg0: i32) -> (i32, i32) {
    %c0_i32 = arith.constant 0 : i32
    %c0_i32_0 = arith.constant 0 : i32
    %c0_i32_1 = arith.constant 0 : i32
    return %c0_i32, %c0_i32_0 : i32, i32
  }
  func.func @transform_10(%arg0: i32) -> (i32, i32) {
    %c0_i32 = arith.constant 0 : i32
    %c0_i32_0 = arith.constant 0 : i32
    %c0_i32_1 = arith.constant 0 : i32
    return %c0_i32, %c0_i32_0 : i32, i32
  }
  func.func @transform_11(%arg0: i32) -> (i32, i32) {
    %c0_i32 = arith.constant 0 : i32
    %c0_i32_0 = arith.constant 0 : i32
    %c0_i32_1 = arith.constant 0 : i32
    return %c0_i32, %c0_i32_0 : i32, i32
  }
  func.func @transform_12(%arg0: i32) -> (i32, i32) {
    %c0_i32 = arith.constant 0 : i32
    %c0_i32_0 = arith.constant 0 : i32
    %c0_i32_1 = arith.constant 0 : i32
    return %c0_i32, %c0_i32_0 : i32, i32
  }
  func.func @transform_13(%arg0: i32) -> (i32, i32) {
    %c0_i32 = arith.constant 0 : i32
    %c0_i32_0 = arith.constant 0 : i32
    %c0_i32_1 = arith.constant 0 : i32
    return %c0_i32, %c0_i32_0 : i32, i32
  }
}

</mosaic_0001>

<llo_original>
// kernel: grud_forward.1
$region0: #{grud_forward.1}
  #allocation0 [shape = 'u32[]', space=smem, size = 0x4, offset = 0x4, fixed_abs, tag = 'smem constant byte address 0x4 - core index']
  #allocation1 [shape = 'u32[144,128]{1,0:T(1,128)}', space=vmem, size = 0x12000, scoped, tag = 'internal scratch']
  #allocation2 [shape = 'f32[8,32]{1,0:T(8,128)}', space=vmem, size = 0x1000, scoped, tag = 'scratch operand']
  #allocation3 [shape = 'f32[64,96]{1,0:T(8,128)}', space=vmem, size = 0x8000, scoped, tag = 'scratch operand']
  #allocation4 [shape = 'f32[64,32]{1,0:T(8,128)}', space=vmem, size = 0x8000, scoped, tag = 'scratch operand']
  %s0 = inlined_call_operand.vmem [shape: f32[64,64], index: 0, kind: input, shape index: {}]
  %s1 = inlined_call_operand.vmem [shape: f32[64,16], index: 1, kind: input, shape index: {}]
  %s2 = inlined_call_operand.vmem [shape: f32[1,16], index: 2, kind: input, shape index: {}]
  %s3 = inlined_call_operand.vmem [shape: f32[1,16], index: 3, kind: input, shape index: {}]
  %s4 = inlined_call_operand.vmem [shape: f32[48,128], index: 4, kind: input, shape index: {}]
  %s5 = inlined_call_operand.vmem [shape: f32[1,96], index: 5, kind: input, shape index: {}]
  %s6 = inlined_call_operand.vmem [shape: f32[1,32], index: 6, kind: input, shape index: {}]
  %s7 = inlined_call_operand.vmem [shape: f32[32,128], index: 7, kind: input, shape index: {}]
  %s8 = inlined_call_operand.vmem [shape: f32[1,32], index: 8, kind: input, shape index: {}]
  %s9 = inlined_call_operand.vmem [shape: f32[32,4], index: 9, kind: input, shape index: {}]
  %s10 = inlined_call_operand.vmem [shape: f32[1,4], index: 10, kind: input, shape index: {}]
  %s11 = inlined_call_operand.hbm [shape: f32[8,32], index: 11, kind: output, shape index: {0}]
  %s12 = inlined_call_operand.vmem [shape: f32[8,4], index: 12, kind: output, shape index: {1}]
  %s13 = inlined_call_operand.vmem [shape: f32[8,4], index: 13, kind: output, shape index: {2}]
  %14 = xla_tuple %s11, %s12, %s13
  %s15 = sld [smem:[#allocation0]]
  $region78: #{grud_forward.1} parent=0
    _
  %s17 = ssub.s32 1, %s15
  %s18 = scalar_select 0, %s17, %s15
  $region1: #{grud_forward.1} parent=0
    #allocation5 [shape = 'u8[4096]{0}', space=vmem, size = 0x1000, scoped, tag = 'output window, operand 0, single buffered']
    #allocation6 [shape = 's32[1]{0}', space=sflag, size = 0x4, scoped, tag = 'scoped memory for grud_forward.1']
    %19 = vsyncpa [#allocation6], 0
    // Predicated region
    $region2: #{grud_forward.1} parent=1 // pred_check
      _
    $region3: #{grud_forward.1} parent=1 // pred_check_branch
      %21 = sbr.rel (0) target = $region5
    $region4: #{grud_forward.1} parent=1 // pred_region
      _
    $region5: #{grud_forward.1} parent=1 // pred_fallthru
      _
    // Predicated region
    $region6: #{grud_forward.1} parent=1 // pred_check
      _
    $region7: #{grud_forward.1} parent=1 // pred_check_branch
      %23 = sbr.rel (0) target = $region9
    $region8: #{grud_forward.1} parent=1 // pred_region
      _
    $region9: #{grud_forward.1} parent=1 // pred_fallthru
      _
    // Predicated region
    $region10: #{grud_forward.1} parent=1 // pred_check
      _
    $region11: #{grud_forward.1} parent=1 // pred_check_branch
      %25 = sbr.rel (0) target = $region13
    $region12: #{grud_forward.1} parent=1 // pred_region
      _
    $region13: #{grud_forward.1} parent=1 // pred_fallthru
      _
    // Predicated region
    $region14: #{grud_forward.1} parent=1 // pred_check
      _
    $region15: #{grud_forward.1} parent=1 // pred_check_branch
      %27 = sbr.rel (0) target = $region17
    $region16: #{grud_forward.1} parent=1 // pred_region
      _
    $region17: #{grud_forward.1} parent=1 // pred_fallthru
      _
    // Predicated region
    $region18: #{grud_forward.1} parent=1 // pred_check
      _
    $region19: #{grud_forward.1} parent=1 // pred_check_branch
      %29 = sbr.rel (0) target = $region21
    $region20: #{grud_forward.1} parent=1 // pred_region
      _
    $region21: #{grud_forward.1} parent=1 // pred_fallthru
      _
    // Predicated region
    $region22: #{grud_forward.1} parent=1 // pred_check
      _
    $region23: #{grud_forward.1} parent=1 // pred_check_branch
      %31 = sbr.rel (0) target = $region25
    $region24: #{grud_forward.1} parent=1 // pred_region
      _
    $region25: #{grud_forward.1} parent=1 // pred_fallthru
      _
    // Predicated region
    $region26: #{grud_forward.1} parent=1 // pred_check
      _
    $region27: #{grud_forward.1} parent=1 // pred_check_branch
      %33 = sbr.rel (0) target = $region29
    $region28: #{grud_forward.1} parent=1 // pred_region
      _
    $region29: #{grud_forward.1} parent=1 // pred_fallthru
      _
    // Predicated region
    $region30: #{grud_forward.1} parent=1 // pred_check
      _
    $region31: #{grud_forward.1} parent=1 // pred_check_branch
      %35 = sbr.rel (0) target = $region33
    $region32: #{grud_forward.1} parent=1 // pred_region
      _
    $region33: #{grud_forward.1} parent=1 // pred_fallthru
      _
    // Predicated region
    $region34: #{grud_forward.1} parent=1 // pred_check
      _
    $region35: #{grud_forward.1} parent=1 // pred_check_branch
      %37 = sbr.rel (0) target = $region37
    $region36: #{grud_forward.1} parent=1 // pred_region
      _
    $region37: #{grud_forward.1} parent=1 // pred_fallthru
      _
    // Predicated region
    $region38: #{grud_forward.1} parent=1 // pred_check
      _
    $region39: #{grud_forward.1} parent=1 // pred_check_branch
      %39 = sbr.rel (0) target = $region41
    $region40: #{grud_forward.1} parent=1 // pred_region
      _
    $region41: #{grud_forward.1} parent=1 // pred_fallthru
      _
    // Predicated region
    $region42: #{grud_forward.1} parent=1 // pred_check
      _
    $region43: #{grud_forward.1} parent=1 // pred_check_branch
      %41 = sbr.rel (0) target = $region45
    $region44: #{grud_forward.1} parent=1 // pred_region
      _
    $region45: #{grud_forward.1} parent=1 // pred_fallthru
      _
    %p42 = scmp.eq.s32.totalorder 0, 0
    // Predicated region
    $region46: #{grud_forward.1} parent=1 // pred_check
      %p43 = pneg %p42
    $region47: #{grud_forward.1} parent=1 // pred_check_branch
      %45 = sbr.rel (%p43) target = $region49
    $region48: #{grud_forward.1} parent=1 // pred_region
      %vm46 = vcmask 261120
      %47 = vst.msk [vmem:[#allocation2] sm:$0xff] %vm46, 0.0
    $region49: #{grud_forward.1} parent=1 // pred_fallthru
      _
    %v48 = vld [vmem:[%s0] sm:$0xff]
    %v49 = vld [vmem:[%s0 + $0x8] sm:$0xff]
    %v50 = vld [vmem:[%s0 + $0x10] sm:$0xff]
    %v51 = vld [vmem:[%s0 + $0x18] sm:$0xff]
    %v52 = vld [vmem:[%s0 + $0x20] sm:$0xff]
    %v53 = vld [vmem:[%s0 + $0x28] sm:$0xff]
    %v54 = vld [vmem:[%s0 + $0x30] sm:$0xff]
    %v55 = vld [vmem:[%s0 + $0x38] sm:$0xff]
    %v56 = vld [vmem:[%s2] sm:$0x1]
    %v58 = vlaneseq
    %v59 = vshrl.u32 %v58, 7
    %v60 = vsub.s32 0, %v59
    %v61 = vrot.slane %v56, %v60
    %62 = vrot.lane.b32.xlu0 %v61, 16
    %v63 = vpop.permute.xlu0 %62
    %v65 = vmul.f32 %v48, %v63
    %v66 = vmul.f32 %v49, %v63
    %v67 = vmul.f32 %v50, %v63
    %v68 = vmul.f32 %v51, %v63
    %v69 = vmul.f32 %v52, %v63
    %v70 = vmul.f32 %v53, %v63
    %v71 = vmul.f32 %v54, %v63
    %v72 = vmul.f32 %v55, %v63
    %v73 = vld [vmem:[%s3] sm:$0x1]
    %v75 = vlaneseq
    %v76 = vshrl.u32 %v75, 7
    %v77 = vsub.s32 0, %v76
    %v78 = vrot.slane %v73, %v77
    %79 = vrot.lane.b32.xlu0 %v78, 16
    %v80 = vpop.permute.xlu0 %79
    %v82 = vadd.f32 %v65, %v80
    %v83 = vadd.f32 %v66, %v80
    %v84 = vadd.f32 %v67, %v80
    %v85 = vadd.f32 %v68, %v80
    %v86 = vadd.f32 %v69, %v80
    %v87 = vadd.f32 %v70, %v80
    %v88 = vadd.f32 %v71, %v80
    %v89 = vadd.f32 %v72, %v80
    %v90 = vmax.f32 %v82, 0.0
    %v91 = vmax.f32 %v83, 0.0
    %v92 = vmax.f32 %v84, 0.0
    %v93 = vmax.f32 %v85, 0.0
    %v94 = vmax.f32 %v86, 0.0
    %v95 = vmax.f32 %v87, 0.0
    %v96 = vmax.f32 %v88, 0.0
    %v97 = vmax.f32 %v89, 0.0
    %v98 = vsub.f32 0.0, %v90
    %v99 = vsub.f32 0.0, %v91
    %v100 = vsub.f32 0.0, %v92
    %v101 = vsub.f32 0.0, %v93
    %v102 = vsub.f32 0.0, %v94
    %v103 = vsub.f32 0.0, %v95
    %v104 = vsub.f32 0.0, %v96
    %v105 = vsub.f32 0.0, %v97
    %v106 = vmul.f32 %v98, 1.442695
    %v107 = vpow.pop %v106
    %v108 = vmul.f32 %v99, 1.442695
    %v109 = vpow.pop %v108
    %v110 = vmul.f32 %v100, 1.442695
    %v111 = vpow.pop %v110
    %v112 = vmul.f32 %v101, 1.442695
    %v113 = vpow.pop %v112
    %v114 = vmul.f32 %v102, 1.442695
    %v115 = vpow.pop %v114
    %v116 = vmul.f32 %v103, 1.442695
    %v117 = vpow.pop %v116
    %v118 = vmul.f32 %v104, 1.442695
    %v119 = vpow.pop %v118
    %v120 = vmul.f32 %v105, 1.442695
    %v121 = vpow.pop %v120
    %130 = vrot.lane.b32.xlu0 %v48, 96
    %v131 = vpop.permute.xlu0 %130
    %132 = vrot.lane.b32.xlu0 %v49, 96
    %v133 = vpop.permute.xlu0 %132
    %134 = vrot.lane.b32.xlu0 %v50, 96
    %v135 = vpop.permute.xlu0 %134
    %136 = vrot.lane.b32.xlu0 %v51, 96
    %v137 = vpop.permute.xlu0 %136
    %138 = vrot.lane.b32.xlu0 %v52, 96
    %v139 = vpop.permute.xlu0 %138
    %140 = vrot.lane.b32.xlu0 %v53, 96
    %v141 = vpop.permute.xlu0 %140
    %142 = vrot.lane.b32.xlu0 %v54, 96
    %v143 = vpop.permute.xlu0 %142
    %144 = vrot.lane.b32.xlu0 %v55, 96
    %v145 = vpop.permute.xlu0 %144
    %v154 = vmul.f32 %v107, %v131
    %v155 = vmul.f32 %v109, %v133
    %v156 = vmul.f32 %v111, %v135
    %v157 = vmul.f32 %v113, %v137
    %v158 = vmul.f32 %v115, %v139
    %v159 = vmul.f32 %v117, %v141
    %v160 = vmul.f32 %v119, %v143
    %v161 = vmul.f32 %v121, %v145
    %v162 = vsub.f32 1.0, %v107
    %v163 = vsub.f32 1.0, %v109
    %v164 = vsub.f32 1.0, %v111
    %v165 = vsub.f32 1.0, %v113
    %v166 = vsub.f32 1.0, %v115
    %v167 = vsub.f32 1.0, %v117
    %v168 = vsub.f32 1.0, %v119
    %v169 = vsub.f32 1.0, %v121
    %v170 = vld [vmem:[%s1] sm:$0xff]
    %v171 = vld [vmem:[%s1 + $0x8] sm:$0xff]
    %v172 = vld [vmem:[%s1 + $0x10] sm:$0xff]
    %v173 = vld [vmem:[%s1 + $0x18] sm:$0xff]
    %v174 = vld [vmem:[%s1 + $0x20] sm:$0xff]
    %v175 = vld [vmem:[%s1 + $0x28] sm:$0xff]
    %v176 = vld [vmem:[%s1 + $0x30] sm:$0xff]
    %v177 = vld [vmem:[%s1 + $0x38] sm:$0xff]
    %186 = vrot.lane.b32.xlu0 %v170, 16
    %v187 = vpop.permute.xlu0 %186
    %188 = vrot.lane.b32.xlu0 %v171, 16
    %v189 = vpop.permute.xlu0 %188
    %190 = vrot.lane.b32.xlu0 %v172, 16
    %v191 = vpop.permute.xlu0 %190
    %192 = vrot.lane.b32.xlu0 %v173, 16
    %v193 = vpop.permute.xlu0 %192
    %194 = vrot.lane.b32.xlu0 %v174, 16
    %v195 = vpop.permute.xlu0 %194
    %196 = vrot.lane.b32.xlu0 %v175, 16
    %v197 = vpop.permute.xlu0 %196
    %198 = vrot.lane.b32.xlu0 %v176, 16
    %v199 = vpop.permute.xlu0 %198
    %200 = vrot.lane.b32.xlu0 %v177, 16
    %v201 = vpop.permute.xlu0 %200
    %v210 = vmul.f32 %v162, %v187
    %v211 = vmul.f32 %v163, %v189
    %v212 = vmul.f32 %v164, %v191
    %v213 = vmul.f32 %v165, %v193
    %v214 = vmul.f32 %v166, %v195
    %v215 = vmul.f32 %v167, %v197
    %v216 = vmul.f32 %v168, %v199
    %v217 = vmul.f32 %v169, %v201
    %v218 = vadd.f32 %v154, %v210
    %v219 = vadd.f32 %v155, %v211
    %v220 = vadd.f32 %v156, %v212
    %v221 = vadd.f32 %v157, %v213
    %v222 = vadd.f32 %v158, %v214
    %v223 = vadd.f32 %v159, %v215
    %v224 = vadd.f32 %v160, %v216
    %v225 = vadd.f32 %v161, %v217
    %v226 = vmul.f32 %v48, %v131
    %v227 = vmul.f32 %v49, %v133
    %v228 = vmul.f32 %v50, %v135
    %v229 = vmul.f32 %v51, %v137
    %v230 = vmul.f32 %v52, %v139
    %v231 = vmul.f32 %v53, %v141
    %v232 = vmul.f32 %v54, %v143
    %v233 = vmul.f32 %v55, %v145
    %v234 = vsub.f32 1.0, %v48
    %v235 = vsub.f32 1.0, %v49
    %v236 = vsub.f32 1.0, %v50
    %v237 = vsub.f32 1.0, %v51
    %v238 = vsub.f32 1.0, %v52
    %v239 = vsub.f32 1.0, %v53
    %v240 = vsub.f32 1.0, %v54
    %v241 = vsub.f32 1.0, %v55
    %250 = vrot.lane.b32.xlu0 %v218, 112
    %v251 = vpop.permute.xlu0 %250
    %252 = vrot.lane.b32.xlu0 %v219, 112
    %v253 = vpop.permute.xlu0 %252
    %254 = vrot.lane.b32.xlu0 %v220, 112
    %v255 = vpop.permute.xlu0 %254
    %256 = vrot.lane.b32.xlu0 %v221, 112
    %v257 = vpop.permute.xlu0 %256
    %258 = vrot.lane.b32.xlu0 %v222, 112
    %v259 = vpop.permute.xlu0 %258
    %260 = vrot.lane.b32.xlu0 %v223, 112
    %v261 = vpop.permute.xlu0 %260
    %262 = vrot.lane.b32.xlu0 %v224, 112
    %v263 = vpop.permute.xlu0 %262
    %264 = vrot.lane.b32.xlu0 %v225, 112
    %v265 = vpop.permute.xlu0 %264
    %v274 = vmul.f32 %v234, %v251
    %v275 = vmul.f32 %v235, %v253
    %v276 = vmul.f32 %v236, %v255
    %v277 = vmul.f32 %v237, %v257
    %v278 = vmul.f32 %v238, %v259
    %v279 = vmul.f32 %v239, %v261
    %v280 = vmul.f32 %v240, %v263
    %v281 = vmul.f32 %v241, %v265
    %v282 = vadd.f32 %v226, %v274
    %v283 = vadd.f32 %v227, %v275
    %v284 = vadd.f32 %v228, %v276
    %v285 = vadd.f32 %v229, %v277
    %v286 = vadd.f32 %v230, %v278
    %v287 = vadd.f32 %v231, %v279
    %v288 = vadd.f32 %v232, %v280
    %v289 = vadd.f32 %v233, %v281
    %290 = vrot.lane.b32.xlu0 %v48, 16
    %v291 = vpop.permute.xlu0 %290
    %292 = vrot.lane.b32.xlu0 %v49, 16
    %v293 = vpop.permute.xlu0 %292
    %294 = vrot.lane.b32.xlu0 %v50, 16
    %v295 = vpop.permute.xlu0 %294
    %296 = vrot.lane.b32.xlu0 %v51, 16
    %v297 = vpop.permute.xlu0 %296
    %298 = vrot.lane.b32.xlu0 %v52, 16
    %v299 = vpop.permute.xlu0 %298
    %300 = vrot.lane.b32.xlu0 %v53, 16
    %v301 = vpop.permute.xlu0 %300
    %302 = vrot.lane.b32.xlu0 %v54, 16
    %v303 = vpop.permute.xlu0 %302
    %304 = vrot.lane.b32.xlu0 %v55, 16
    %v305 = vpop.permute.xlu0 %304
    %vm314 = vcmask 130048
    %v315 = vsel %vm314, %v282, %v291
    %v316 = vsel %vm314, %v283, %v293
    %v317 = vsel %vm314, %v284, %v295
    %v318 = vsel %vm314, %v285, %v297
    %v319 = vsel %vm314, %v286, %v299
    %v320 = vsel %vm314, %v287, %v301
    %v321 = vsel %vm314, %v288, %v303
    %v322 = vsel %vm314, %v289, %v305
    %v323 = vld [vmem:[%s4] sm:$0xff]
    %v324 = vld [vmem:[%s4 + $0x8] sm:$0xff]
    %v325 = vld [vmem:[%s4 + $0x10] sm:$0xff]
    %v326 = vld [vmem:[%s4 + $0x18] sm:$0xff]
    %v327 = vld [vmem:[%s4 + $0x20] sm:$0xff]
    %v328 = vld [vmem:[%s4 + $0x28] sm:$0xff]
    %vm329 = vcmask 392192
    %v331 = vsel %vm329, %v315, 0
    %v334 = vsel %vm329, %v316, 0
    %v337 = vsel %vm329, %v317, 0
    %v340 = vsel %vm329, %v318, 0
    %v343 = vsel %vm329, %v319, 0
    %v346 = vsel %vm329, %v320, 0
    %v349 = vsel %vm329, %v321, 0
    %v352 = vsel %vm329, %v322, 0
    %354 = vmatprep.subr.mxu0 0.0
    %355 = vmatpush1.msra.mxu0 0.0
    %356 = vmatprep.subr.mxu0 0.0
    %357 = vmatpush1.msra.mxu0 0.0
    %358 = vmatprep.subr.mxu0 0.0
    %359 = vmatpush1.msra.mxu0 0.0
    %360 = vmatprep.subr.mxu0 0.0
    %361 = vmatpush1.msra.mxu0 0.0
    %362 = vmatprep.subr.mxu0 0.0
    %363 = vmatpush1.msra.mxu0 0.0
    %364 = vmatprep.subr.mxu0 0.0
    %365 = vmatpush1.msra.mxu0 0.0
    %366 = vmatprep.subr.mxu0 0.0
    %367 = vmatpush1.msra.mxu0 0.0
    %368 = vmatprep.subr.mxu0 0.0
    %369 = vmatpush1.msra.mxu0 0.0
    %370 = vmatprep.subr.mxu0 0.0
    %371 = vmatpush1.msra.mxu0 0.0
    %372 = vmatprep.subr.mxu0 0.0
    %373 = vmatpush1.msra.mxu0 0.0
    %374 = vmatprep.subr.mxu0 0.0
    %375 = vmatpush1.msra.mxu0 %v328
    %376 = vmatprep.subr.mxu0 0.0
    %377 = vmatpush1.msra.mxu0 %v327
    %378 = vmatprep.subr.mxu0 0.0
    %379 = vmatpush1.msra.mxu0 %v326
    %380 = vmatprep.subr.mxu0 0.0
    %381 = vmatpush1.msra.mxu0 %v325
    %382 = vmatprep.subr.mxu0 0.0
    %383 = vmatpush1.msra.mxu0 %v324
    %384 = vmatprep.subr.mxu0 0.0
    %385 = vmatpush1.msra.mxu0 %v323
    %386 = vmatprep.subr.mxu0 0.0
    %387 = vmatpush2.msra.mxu0 0.0
    %388 = vmatprep.subr.mxu0 0.0
    %389 = vmatpush2.msra.mxu0 0.0
    %390 = vmatprep.subr.mxu0 0.0
    %391 = vmatpush2.msra.mxu0 0.0
    %392 = vmatprep.subr.mxu0 0.0
    %393 = vmatpush2.msra.mxu0 0.0
    %394 = vmatprep.subr.mxu0 0.0
    %395 = vmatpush2.msra.mxu0 0.0
    %396 = vmatprep.subr.mxu0 0.0
    %397 = vmatpush2.msra.mxu0 0.0
    %398 = vmatprep.subr.mxu0 0.0
    %399 = vmatpush2.msra.mxu0 0.0
    %400 = vmatprep.subr.mxu0 0.0
    %401 = vmatpush2.msra.mxu0 0.0
    %402 = vmatprep.subr.mxu0 0.0
    %403 = vmatpush2.msra.mxu0 0.0
    %404 = vmatprep.subr.mxu0 0.0
    %405 = vmatpush2.msra.mxu0 0.0
    %406 = vmatprep.subr.mxu0 0.0
    %407 = vmatpush2.msra.mxu0 0.0
    %408 = vmatprep.subr.mxu0 0.0
    %409 = vmatpush2.msra.mxu0 0.0
    %410 = vmatprep.subr.mxu0 0.0
    %411 = vmatpush2.msra.mxu0 0.0
    %412 = vmatprep.subr.mxu0 0.0
    %413 = vmatpush2.msra.mxu0 0.0
    %414 = vmatprep.subr.mxu0 0.0
    %415 = vmatpush2.msra.mxu0 0.0
    %416 = vmatprep.subr.mxu0 0.0
    %417 = vmatpush2.msra.mxu0 0.0
    %418 = vmatprep.mubr.f32.mxu0 0.0
    %419 = vmatmul.mubr.f32.gmra.mxu0 %v331
    %v420 = vpop.f32.mrf.mxu0
    %v421 = vadd.f32 0.0, %v420
    %v422 = vpop.f32.mrf.mxu0
    %423 = vmatprep.mubr.f32.mxu0 0.0
    %424 = vmatmul.mubr.f32.gmra.mxu0 %v334
    %v425 = vpop.f32.mrf.mxu0
    %v426 = vadd.f32 0.0, %v425
    %v427 = vpop.f32.mrf.mxu0
    %428 = vmatprep.mubr.f32.mxu0 0.0
    %429 = vmatmul.mubr.f32.gmra.mxu0 %v337
    %v430 = vpop.f32.mrf.mxu0
    %v431 = vadd.f32 0.0, %v430
    %v432 = vpop.f32.mrf.mxu0
    %433 = vmatprep.mubr.f32.mxu0 0.0
    %434 = vmatmul.mubr.f32.gmra.mxu0 %v340
    %v435 = vpop.f32.mrf.mxu0
    %v436 = vadd.f32 0.0, %v435
    %v437 = vpop.f32.mrf.mxu0
    %438 = vmatprep.mubr.f32.mxu0 0.0
    %439 = vmatmul.mubr.f32.gmra.mxu0 %v343
    %v440 = vpop.f32.mrf.mxu0
    %v441 = vadd.f32 0.0, %v440
    %v442 = vpop.f32.mrf.mxu0
    %443 = vmatprep.mubr.f32.mxu0 0.0
    %444 = vmatmul.mubr.f32.gmra.mxu0 %v346
    %v445 = vpop.f32.mrf.mxu0
    %v446 = vadd.f32 0.0, %v445
    %v447 = vpop.f32.mrf.mxu0
    %448 = vmatprep.mubr.f32.mxu0 0.0
    %449 = vmatmul.mubr.f32.gmra.mxu0 %v349
    %v450 = vpop.f32.mrf.mxu0
    %v451 = vadd.f32 0.0, %v450
    %v452 = vpop.f32.mrf.mxu0
    %453 = vmatprep.mubr.f32.mxu0 0.0
    %454 = vmatmul.mubr.f32.gmra.mxu0 %v352
    %v455 = vpop.f32.mrf.mxu0
    %v456 = vadd.f32 0.0, %v455
    %v457 = vpop.f32.mrf.mxu0
    %458 = vdwg.mxu0
    %v459 = vld [vmem:[%s5] sm:$0x1]
    %v461 = vlaneseq
    %v462 = vshrl.u32 %v461, 7
    %v463 = vsub.s32 0, %v462
    %v464 = vrot.slane %v459, %v463
    %v466 = vadd.f32 %v421, %v464
    %v467 = vadd.f32 %v426, %v464
    %v468 = vadd.f32 %v431, %v464
    %v469 = vadd.f32 %v436, %v464
    %v470 = vadd.f32 %v441, %v464
    %v471 = vadd.f32 %v446, %v464
    %v472 = vadd.f32 %v451, %v464
    %v473 = vadd.f32 %v456, %v464
    %vm474 = vcmask 785408
    %475 = vst.msk [vmem:[#allocation3] sm:$0xff] %vm474, %v466
    %476 = vst.msk [vmem:[#allocation3 + $0x8] sm:$0xff] %vm474, %v467
    %477 = vst.msk [vmem:[#allocation3 + $0x10] sm:$0xff] %vm474, %v468
    %478 = vst.msk [vmem:[#allocation3 + $0x18] sm:$0xff] %vm474, %v469
    %479 = vst.msk [vmem:[#allocation3 + $0x20] sm:$0xff] %vm474, %v470
    %480 = vst.msk [vmem:[#allocation3 + $0x28] sm:$0xff] %vm474, %v471
    %481 = vst.msk [vmem:[#allocation3 + $0x30] sm:$0xff] %vm474, %v472
    %482 = vst.msk [vmem:[#allocation3 + $0x38] sm:$0xff] %vm474, %v473
    %v483 = vld [vmem:[%s6] sm:$0x1]
    %v485 = vlaneseq
    %v486 = vshrl.u32 %v485, 7
    %v487 = vsub.s32 0, %v486
    %v488 = vrot.slane %v483, %v487
    %489 = vrot.lane.b32.xlu0 %v488, 96
    %v490 = vpop.permute.xlu0 %489
    %v492 = vadd.f32 %v421, %v490
    %v493 = vadd.f32 %v426, %v490
    %v494 = vadd.f32 %v431, %v490
    %v495 = vadd.f32 %v436, %v490
    %v496 = vadd.f32 %v441, %v490
    %v497 = vadd.f32 %v446, %v490
    %v498 = vadd.f32 %v451, %v490
    %v499 = vadd.f32 %v456, %v490
    %v500 = vmax.f32 %v492, 0.0
    %v501 = vmax.f32 %v493, 0.0
    %v502 = vmax.f32 %v494, 0.0
    %v503 = vmax.f32 %v495, 0.0
    %v504 = vmax.f32 %v496, 0.0
    %v505 = vmax.f32 %v497, 0.0
    %v506 = vmax.f32 %v498, 0.0
    %v507 = vmax.f32 %v499, 0.0
    %v508 = vsub.f32 0.0, %v500
    %v509 = vsub.f32 0.0, %v501
    %v510 = vsub.f32 0.0, %v502
    %v511 = vsub.f32 0.0, %v503
    %v512 = vsub.f32 0.0, %v504
    %v513 = vsub.f32 0.0, %v505
    %v514 = vsub.f32 0.0, %v506
    %v515 = vsub.f32 0.0, %v507
    %v516 = vmul.f32 %v508, 1.442695
    %v517 = vpow.pop %v516
    %v518 = vmul.f32 %v509, 1.442695
    %v519 = vpow.pop %v518
    %v520 = vmul.f32 %v510, 1.442695
    %v521 = vpow.pop %v520
    %v522 = vmul.f32 %v511, 1.442695
    %v523 = vpow.pop %v522
    %v524 = vmul.f32 %v512, 1.442695
    %v525 = vpow.pop %v524
    %v526 = vmul.f32 %v513, 1.442695
    %v527 = vpow.pop %v526
    %v528 = vmul.f32 %v514, 1.442695
    %v529 = vpow.pop %v528
    %v530 = vmul.f32 %v515, 1.442695
    %v531 = vpow.pop %v530
    %540 = vrot.lane.b32.xlu0 %v517, 32
    %v541 = vpop.permute.xlu0 %540
    %542 = vrot.lane.b32.xlu0 %v519, 32
    %v543 = vpop.permute.xlu0 %542
    %544 = vrot.lane.b32.xlu0 %v521, 32
    %v545 = vpop.permute.xlu0 %544
    %546 = vrot.lane.b32.xlu0 %v523, 32
    %v547 = vpop.permute.xlu0 %546
    %548 = vrot.lane.b32.xlu0 %v525, 32
    %v549 = vpop.permute.xlu0 %548
    %550 = vrot.lane.b32.xlu0 %v527, 32
    %v551 = vpop.permute.xlu0 %550
    %552 = vrot.lane.b32.xlu0 %v529, 32
    %v553 = vpop.permute.xlu0 %552
    %554 = vrot.lane.b32.xlu0 %v531, 32
    %v555 = vpop.permute.xlu0 %554
    %vm564 = vcmask 261120
    %565 = vst.msk [vmem:[#allocation4] sm:$0xff] %vm564, %v541
    %566 = vst.msk [vmem:[#allocation4 + $0x8] sm:$0xff] %vm564, %v543
    %567 = vst.msk [vmem:[#allocation4 + $0x10] sm:$0xff] %vm564, %v545
    %568 = vst.msk [vmem:[#allocation4 + $0x18] sm:$0xff] %vm564, %v547
    %569 = vst.msk [vmem:[#allocation4 + $0x20] sm:$0xff] %vm564, %v549
    %570 = vst.msk [vmem:[#allocation4 + $0x28] sm:$0xff] %vm564, %v551
    %571 = vst.msk [vmem:[#allocation4 + $0x30] sm:$0xff] %vm564, %v553
    %572 = vst.msk [vmem:[#allocation4 + $0x38] sm:$0xff] %vm564, %v555
    %v573 = vld [vmem:[%s7] sm:$0xff]
    %v574 = vld [vmem:[%s7 + $0x8] sm:$0xff]
    %v575 = vld [vmem:[%s7 + $0x10] sm:$0xff]
    %v576 = vld [vmem:[%s7 + $0x18] sm:$0xff]
    %v577 = vld [vmem:[%s8] sm:$0x1]
    %v578 = vld [vmem:[#allocation2] sm:$0xff]
    %v579 = vld [vmem:[#allocation4] sm:$0xff]
    %v580 = vld [vmem:[#allocation3] sm:$0xff]
    %v581 = vmul.f32 %v578, %v579
    %v583 = vsel %vm564, %v581, 0
    %585 = vmatprep.subr.mxu0 0.0
    %586 = vmatpush1.msra.mxu0 0.0
    %587 = vmatprep.subr.mxu0 0.0
    %588 = vmatpush1.msra.mxu0 0.0
    %589 = vmatprep.subr.mxu0 0.0
    %590 = vmatpush1.msra.mxu0 0.0
    %591 = vmatprep.subr.mxu0 0.0
    %592 = vmatpush1.msra.mxu0 0.0
    %593 = vmatprep.subr.mxu0 0.0
    %594 = vmatpush1.msra.mxu0 0.0
    %595 = vmatprep.subr.mxu0 0.0
    %596 = vmatpush1.msra.mxu0 0.0
    %597 = vmatprep.subr.mxu0 0.0
    %598 = vmatpush1.msra.mxu0 0.0
    %599 = vmatprep.subr.mxu0 0.0
    %600 = vmatpush1.msra.mxu0 0.0
    %601 = vmatprep.subr.mxu0 0.0
    %602 = vmatpush1.msra.mxu0 0.0
    %603 = vmatprep.subr.mxu0 0.0
    %604 = vmatpush1.msra.mxu0 0.0
    %605 = vmatprep.subr.mxu0 0.0
    %606 = vmatpush1.msra.mxu0 0.0
    %607 = vmatprep.subr.mxu0 0.0
    %608 = vmatpush1.msra.mxu0 0.0
    %609 = vmatprep.subr.mxu0 0.0
    %610 = vmatpush1.msra.mxu0 %v576
    %611 = vmatprep.subr.mxu0 0.0
    %612 = vmatpush1.msra.mxu0 %v575
    %613 = vmatprep.subr.mxu0 0.0
    %614 = vmatpush1.msra.mxu0 %v574
    %615 = vmatprep.subr.mxu0 0.0
    %616 = vmatpush1.msra.mxu0 %v573
    %617 = vmatprep.subr.mxu0 0.0
    %618 = vmatpush2.msra.mxu0 0.0
    %619 = vmatprep.subr.mxu0 0.0
    %620 = vmatpush2.msra.mxu0 0.0
    %621 = vmatprep.subr.mxu0 0.0
    %622 = vmatpush2.msra.mxu0 0.0
    %623 = vmatprep.subr.mxu0 0.0
    %624 = vmatpush2.msra.mxu0 0.0
    %625 = vmatprep.subr.mxu0 0.0
    %626 = vmatpush2.msra.mxu0 0.0
    %627 = vmatprep.subr.mxu0 0.0
    %628 = vmatpush2.msra.mxu0 0.0
    %629 = vmatprep.subr.mxu0 0.0
    %630 = vmatpush2.msra.mxu0 0.0
    %631 = vmatprep.subr.mxu0 0.0
    %632 = vmatpush2.msra.mxu0 0.0
    %633 = vmatprep.subr.mxu0 0.0
    %634 = vmatpush2.msra.mxu0 0.0
    %635 = vmatprep.subr.mxu0 0.0
    %636 = vmatpush2.msra.mxu0 0.0
    %637 = vmatprep.subr.mxu0 0.0
    %638 = vmatpush2.msra.mxu0 0.0
    %639 = vmatprep.subr.mxu0 0.0
    %640 = vmatpush2.msra.mxu0 0.0
    %641 = vmatprep.subr.mxu0 0.0
    %642 = vmatpush2.msra.mxu0 0.0
    %643 = vmatprep.subr.mxu0 0.0
    %644 = vmatpush2.msra.mxu0 0.0
    %645 = vmatprep.subr.mxu0 0.0
    %646 = vmatpush2.msra.mxu0 0.0
    %647 = vmatprep.subr.mxu0 0.0
    %648 = vmatpush2.msra.mxu0 0.0
    %649 = vmatprep.mubr.f32.mxu0 0.0
    %650 = vmatmul.mubr.f32.gmra.mxu0 %v583
    %v651 = vpop.f32.mrf.mxu0
    %v652 = vadd.f32 0.0, %v651
    %v653 = vpop.f32.mrf.mxu0
    %654 = vdwg.mxu0
    %v655 = vadd.f32 %v580, %v652
    %v656 = vxor.u32 %v655, 2147483648
    %v657 = vmul.f32 %v656, 1.442695
    %v658 = vpow.pop %v657
    %v659 = vadd.f32 %v658, 1.0
    %v660 = vrcp.pop %v659
    %v661 = vmul.f32 1.0, %v660
    %v663 = vlaneseq
    %v664 = vshrl.u32 %v663, 7
    %v665 = vsub.s32 0, %v664
    %v666 = vrot.slane %v577, %v665
    %667 = vrot.lane.b32.xlu0 %v666, 96
    %v668 = vpop.permute.xlu0 %667
    %v670 = vadd.f32 %v652, %v668
    %672 = vrot.lane.b32.xlu0 %v670, 32
    %v673 = vpop.permute.xlu0 %672
    %v675 = vmul.f32 %v661, %v673
    %677 = vrot.lane.b32.xlu0 %v675, 64
    %v678 = vpop.permute.xlu0 %677
    %v680 = vadd.f32 %v655, %v678
    %v681 = vtanh.pop %v680
    %v682 = vsub.f32 1.0, %v661
    %684 = vrot.lane.b32.xlu0 %v681, 96
    %v685 = vpop.permute.xlu0 %684
    %v687 = vmul.f32 %v682, %v685
    %688 = vrot.lane.b32.xlu0 %v581, 32
    %v689 = vpop.permute.xlu0 %688
    %v691 = vmul.f32 %v661, %v689
    %v692 = vadd.f32 %v687, %v691
    %s693 = scalar_lea.vmem [#allocation4], 8
    %v694 = vld [vmem:[%s693] sm:$0xff]
    %s695 = scalar_lea.vmem [#allocation3], 8
    %v696 = vld [vmem:[%s695] sm:$0xff]
    %698 = vrot.lane.b32.xlu0 %v694, 32
    %v699 = vpop.permute.xlu0 %698
    %v701 = vmul.f32 %v692, %v699
    %703 = vrot.lane.b32.xlu0 %v701, 96
    %v704 = vpop.permute.xlu0 %703
    %v705 = vsel %vm564, %v704, 0
    %707 = vmatprep.subr.mxu0 0.0
    %708 = vmatpush1.msra.mxu0 0.0
    %709 = vmatprep.subr.mxu0 0.0
    %710 = vmatpush1.msra.mxu0 0.0
    %711 = vmatprep.subr.mxu0 0.0
    %712 = vmatpush1.msra.mxu0 0.0
    %713 = vmatprep.subr.mxu0 0.0
    %714 = vmatpush1.msra.mxu0 0.0
    %715 = vmatprep.subr.mxu0 0.0
    %716 = vmatpush1.msra.mxu0 0.0
    %717 = vmatprep.subr.mxu0 0.0
    %718 = vmatpush1.msra.mxu0 0.0
    %719 = vmatprep.subr.mxu0 0.0
    %720 = vmatpush1.msra.mxu0 0.0
    %721 = vmatprep.subr.mxu0 0.0
    %722 = vmatpush1.msra.mxu0 0.0
    %723 = vmatprep.subr.mxu0 0.0
    %724 = vmatpush1.msra.mxu0 0.0
    %725 = vmatprep.subr.mxu0 0.0
    %726 = vmatpush1.msra.mxu0 0.0
    %727 = vmatprep.subr.mxu0 0.0
    %728 = vmatpush1.msra.mxu0 0.0
    %729 = vmatprep.subr.mxu0 0.0
    %730 = vmatpush1.msra.mxu0 0.0
    %731 = vmatprep.subr.mxu0 0.0
    %732 = vmatpush1.msra.mxu0 %v576
    %733 = vmatprep.subr.mxu0 0.0
    %734 = vmatpush1.msra.mxu0 %v575
    %735 = vmatprep.subr.mxu0 0.0
    %736 = vmatpush1.msra.mxu0 %v574
    %737 = vmatprep.subr.mxu0 0.0
    %738 = vmatpush1.msra.mxu0 %v573
    %739 = vmatprep.subr.mxu0 0.0
    %740 = vmatpush2.msra.mxu0 0.0
    %741 = vmatprep.subr.mxu0 0.0
    %742 = vmatpush2.msra.mxu0 0.0
    %743 = vmatprep.subr.mxu0 0.0
    %744 = vmatpush2.msra.mxu0 0.0
    %745 = vmatprep.subr.mxu0 0.0
    %746 = vmatpush2.msra.mxu0 0.0
    %747 = vmatprep.subr.mxu0 0.0
    %748 = vmatpush2.msra.mxu0 0.0
    %749 = vmatprep.subr.mxu0 0.0
    %750 = vmatpush2.msra.mxu0 0.0
    %751 = vmatprep.subr.mxu0 0.0
    %752 = vmatpush2.msra.mxu0 0.0
    %753 = vmatprep.subr.mxu0 0.0
    %754 = vmatpush2.msra.mxu0 0.0
    %755 = vmatprep.subr.mxu0 0.0
    %756 = vmatpush2.msra.mxu0 0.0
    %757 = vmatprep.subr.mxu0 0.0
    %758 = vmatpush2.msra.mxu0 0.0
    %759 = vmatprep.subr.mxu0 0.0
    %760 = vmatpush2.msra.mxu0 0.0
    %761 = vmatprep.subr.mxu0 0.0
    %762 = vmatpush2.msra.mxu0 0.0
    %763 = vmatprep.subr.mxu0 0.0
    %764 = vmatpush2.msra.mxu0 0.0
    %765 = vmatprep.subr.mxu0 0.0
    %766 = vmatpush2.msra.mxu0 0.0
    %767 = vmatprep.subr.mxu0 0.0
    %768 = vmatpush2.msra.mxu0 0.0
    %769 = vmatprep.subr.mxu0 0.0
    %770 = vmatpush2.msra.mxu0 0.0
    %771 = vmatprep.mubr.f32.mxu0 0.0
    %772 = vmatmul.mubr.f32.gmra.mxu0 %v705
    %v773 = vpop.f32.mrf.mxu0
    %v774 = vadd.f32 0.0, %v773
    %v775 = vpop.f32.mrf.mxu0
    %776 = vdwg.mxu0
    %v777 = vadd.f32 %v696, %v774
    %v778 = vxor.u32 %v777, 2147483648
    %v779 = vmul.f32 %v778, 1.442695
    %v780 = vpow.pop %v779
    %v781 = vadd.f32 %v780, 1.0
    %v782 = vrcp.pop %v781
    %v783 = vmul.f32 1.0, %v782
    %v784 = vadd.f32 %v774, %v668
    %786 = vrot.lane.b32.xlu0 %v784, 32
    %v787 = vpop.permute.xlu0 %786
    %v789 = vmul.f32 %v783, %v787
    %791 = vrot.lane.b32.xlu0 %v789, 64
    %v792 = vpop.permute.xlu0 %791
    %v794 = vadd.f32 %v777, %v792
    %v795 = vtanh.pop %v794
    %v796 = vsub.f32 1.0, %v783
    %798 = vrot.lane.b32.xlu0 %v795, 96
    %v799 = vpop.permute.xlu0 %798
    %v801 = vmul.f32 %v796, %v799
    %v802 = vmul.f32 %v783, %v701
    %v803 = vadd.f32 %v801, %v802
    %s804 = scalar_lea.vmem [#allocation4], 16
    %v805 = vld [vmem:[%s804] sm:$0xff]
    %s806 = scalar_lea.vmem [#allocation3], 16
    %v807 = vld [vmem:[%s806] sm:$0xff]
    %809 = vrot.lane.b32.xlu0 %v805, 32
    %v810 = vpop.permute.xlu0 %809
    %v812 = vmul.f32 %v803, %v810
    %814 = vrot.lane.b32.xlu0 %v812, 96
    %v815 = vpop.permute.xlu0 %814
    %v816 = vsel %vm564, %v815, 0
    %818 = vmatprep.subr.mxu0 0.0
    %819 = vmatpush1.msra.mxu0 0.0
    %820 = vmatprep.subr.mxu0 0.0
    %821 = vmatpush1.msra.mxu0 0.0
    %822 = vmatprep.subr.mxu0 0.0
    %823 = vmatpush1.msra.mxu0 0.0
    %824 = vmatprep.subr.mxu0 0.0
    %825 = vmatpush1.msra.mxu0 0.0
    %826 = vmatprep.subr.mxu0 0.0
    %827 = vmatpush1.msra.mxu0 0.0
    %828 = vmatprep.subr.mxu0 0.0
    %829 = vmatpush1.msra.mxu0 0.0
    %830 = vmatprep.subr.mxu0 0.0
    %831 = vmatpush1.msra.mxu0 0.0
    %832 = vmatprep.subr.mxu0 0.0
    %833 = vmatpush1.msra.mxu0 0.0
    %834 = vmatprep.subr.mxu0 0.0
    %835 = vmatpush1.msra.mxu0 0.0
    %836 = vmatprep.subr.mxu0 0.0
    %837 = vmatpush1.msra.mxu0 0.0
    %838 = vmatprep.subr.mxu0 0.0
    %839 = vmatpush1.msra.mxu0 0.0
    %840 = vmatprep.subr.mxu0 0.0
    %841 = vmatpush1.msra.mxu0 0.0
    %842 = vmatprep.subr.mxu0 0.0
    %843 = vmatpush1.msra.mxu0 %v576
    %844 = vmatprep.subr.mxu0 0.0
    %845 = vmatpush1.msra.mxu0 %v575
    %846 = vmatprep.subr.mxu0 0.0
    %847 = vmatpush1.msra.mxu0 %v574
    %848 = vmatprep.subr.mxu0 0.0
    %849 = vmatpush1.msra.mxu0 %v573
    %850 = vmatprep.subr.mxu0 0.0
    %851 = vmatpush2.msra.mxu0 0.0
    %852 = vmatprep.subr.mxu0 0.0
    %853 = vmatpush2.msra.mxu0 0.0
    %854 = vmatprep.subr.mxu0 0.0
    %855 = vmatpush2.msra.mxu0 0.0
    %856 = vmatprep.subr.mxu0 0.0
    %857 = vmatpush2.msra.mxu0 0.0
    %858 = vmatprep.subr.mxu0 0.0
    %859 = vmatpush2.msra.mxu0 0.0
    %860 = vmatprep.subr.mxu0 0.0
    %861 = vmatpush2.msra.mxu0 0.0
    %862 = vmatprep.subr.mxu0 0.0
    %863 = vmatpush2.msra.mxu0 0.0
    %864 = vmatprep.subr.mxu0 0.0
    %865 = vmatpush2.msra.mxu0 0.0
    %866 = vmatprep.subr.mxu0 0.0
    %867 = vmatpush2.msra.mxu0 0.0
    %868 = vmatprep.subr.mxu0 0.0
    %869 = vmatpush2.msra.mxu0 0.0
    %870 = vmatprep.subr.mxu0 0.0
    %871 = vmatpush2.msra.mxu0 0.0
    %872 = vmatprep.subr.mxu0 0.0
    %873 = vmatpush2.msra.mxu0 0.0
    %874 = vmatprep.subr.mxu0 0.0
    %875 = vmatpush2.msra.mxu0 0.0
    %876 = vmatprep.subr.mxu0 0.0
    %877 = vmatpush2.msra.mxu0 0.0
    %878 = vmatprep.subr.mxu0 0.0
    %879 = vmatpush2.msra.mxu0 0.0
    %880 = vmatprep.subr.mxu0 0.0
    %881 = vmatpush2.msra.mxu0 0.0
    %882 = vmatprep.mubr.f32.mxu0 0.0
    %883 = vmatmul.mubr.f32.gmra.mxu0 %v816
    %v884 = vpop.f32.mrf.mxu0
    %v885 = vadd.f32 0.0, %v884
    %v886 = vpop.f32.mrf.mxu0
    %887 = vdwg.mxu0
    %v888 = vadd.f32 %v807, %v885
    %v889 = vxor.u32 %v888, 2147483648
    %v890 = vmul.f32 %v889, 1.442695
    %v891 = vpow.pop %v890
    %v892 = vadd.f32 %v891, 1.0
    %v893 = vrcp.pop %v892
    %v894 = vmul.f32 1.0, %v893
    %v895 = vadd.f32 %v885, %v668
    %897 = vrot.lane.b32.xlu0 %v895, 32
    %v898 = vpop.permute.xlu0 %897
    %v900 = vmul.f32 %v894, %v898
    %902 = vrot.lane.b32.xlu0 %v900, 64
    %v903 = vpop.permute.xlu0 %902
    %v905 = vadd.f32 %v888, %v903
    %v906 = vtanh.pop %v905
    %v907 = vsub.f32 1.0, %v894
    %909 = vrot.lane.b32.xlu0 %v906, 96
    %v910 = vpop.permute.xlu0 %909
    %v912 = vmul.f32 %v907, %v910
    %v913 = vmul.f32 %v894, %v812
    %v914 = vadd.f32 %v912, %v913
    %s915 = scalar_lea.vmem [#allocation4], 24
    %v916 = vld [vmem:[%s915] sm:$0xff]
    %s917 = scalar_lea.vmem [#allocation3], 24
    %v918 = vld [vmem:[%s917] sm:$0xff]
    %920 = vrot.lane.b32.xlu0 %v916, 32
    %v921 = vpop.permute.xlu0 %920
    %v923 = vmul.f32 %v914, %v921
    %925 = vrot.lane.b32.xlu0 %v923, 96
    %v926 = vpop.permute.xlu0 %925
    %v927 = vsel %vm564, %v926, 0
    %929 = vmatprep.subr.mxu0 0.0
    %930 = vmatpush1.msra.mxu0 0.0
    %931 = vmatprep.subr.mxu0 0.0
    %932 = vmatpush1.msra.mxu0 0.0
    %933 = vmatprep.subr.mxu0 0.0
    %934 = vmatpush1.msra.mxu0 0.0
    %935 = vmatprep.subr.mxu0 0.0
    %936 = vmatpush1.msra.mxu0 0.0
    %937 = vmatprep.subr.mxu0 0.0
    %938 = vmatpush1.msra.mxu0 0.0
    %939 = vmatprep.subr.mxu0 0.0
    %940 = vmatpush1.msra.mxu0 0.0
    %941 = vmatprep.subr.mxu0 0.0
    %942 = vmatpush1.msra.mxu0 0.0
    %943 = vmatprep.subr.mxu0 0.0
    %944 = vmatpush1.msra.mxu0 0.0
    %945 = vmatprep.subr.mxu0 0.0
    %946 = vmatpush1.msra.mxu0 0.0
    %947 = vmatprep.subr.mxu0 0.0
    %948 = vmatpush1.msra.mxu0 0.0
    %949 = vmatprep.subr.mxu0 0.0
    %950 = vmatpush1.msra.mxu0 0.0
    %951 = vmatprep.subr.mxu0 0.0
    %952 = vmatpush1.msra.mxu0 0.0
    %953 = vmatprep.subr.mxu0 0.0
    %954 = vmatpush1.msra.mxu0 %v576
    %955 = vmatprep.subr.mxu0 0.0
    %956 = vmatpush1.msra.mxu0 %v575
    %957 = vmatprep.subr.mxu0 0.0
    %958 = vmatpush1.msra.mxu0 %v574
    %959 = vmatprep.subr.mxu0 0.0
    %960 = vmatpush1.msra.mxu0 %v573
    %961 = vmatprep.subr.mxu0 0.0
    %962 = vmatpush2.msra.mxu0 0.0
    %963 = vmatprep.subr.mxu0 0.0
    %964 = vmatpush2.msra.mxu0 0.0
    %965 = vmatprep.subr.mxu0 0.0
    %966 = vmatpush2.msra.mxu0 0.0
    %967 = vmatprep.subr.mxu0 0.0
    %968 = vmatpush2.msra.mxu0 0.0
    %969 = vmatprep.subr.mxu0 0.0
    %970 = vmatpush2.msra.mxu0 0.0
    %971 = vmatprep.subr.mxu0 0.0
    %972 = vmatpush2.msra.mxu0 0.0
    %973 = vmatprep.subr.mxu0 0.0
    %974 = vmatpush2.msra.mxu0 0.0
    %975 = vmatprep.subr.mxu0 0.0
    %976 = vmatpush2.msra.mxu0 0.0
    %977 = vmatprep.subr.mxu0 0.0
    %978 = vmatpush2.msra.mxu0 0.0
    %979 = vmatprep.subr.mxu0 0.0
    %980 = vmatpush2.msra.mxu0 0.0
    %981 = vmatprep.subr.mxu0 0.0
    %982 = vmatpush2.msra.mxu0 0.0
    %983 = vmatprep.subr.mxu0 0.0
    %984 = vmatpush2.msra.mxu0 0.0
    %985 = vmatprep.subr.mxu0 0.0
    %986 = vmatpush2.msra.mxu0 0.0
    %987 = vmatprep.subr.mxu0 0.0
    %988 = vmatpush2.msra.mxu0 0.0
    %989 = vmatprep.subr.mxu0 0.0
    %990 = vmatpush2.msra.mxu0 0.0
    %991 = vmatprep.subr.mxu0 0.0
    %992 = vmatpush2.msra.mxu0 0.0
    %993 = vmatprep.mubr.f32.mxu0 0.0
    %994 = vmatmul.mubr.f32.gmra.mxu0 %v927
    %v995 = vpop.f32.mrf.mxu0
    %v996 = vadd.f32 0.0, %v995
    %v997 = vpop.f32.mrf.mxu0
    %998 = vdwg.mxu0
    %v999 = vadd.f32 %v918, %v996
    %v1000 = vxor.u32 %v999, 2147483648
    %v1001 = vmul.f32 %v1000, 1.442695
    %v1002 = vpow.pop %v1001
    %v1003 = vadd.f32 %v1002, 1.0
    %v1004 = vrcp.pop %v1003
    %v1005 = vmul.f32 1.0, %v1004
    %v1006 = vadd.f32 %v996, %v668
    %1008 = vrot.lane.b32.xlu0 %v1006, 32
    %v1009 = vpop.permute.xlu0 %1008
    %v1011 = vmul.f32 %v1005, %v1009
    %1013 = vrot.lane.b32.xlu0 %v1011, 64
    %v1014 = vpop.permute.xlu0 %1013
    %v1016 = vadd.f32 %v999, %v1014
    %v1017 = vtanh.pop %v1016
    %v1018 = vsub.f32 1.0, %v1005
    %1020 = vrot.lane.b32.xlu0 %v1017, 96
    %v1021 = vpop.permute.xlu0 %1020
    %v1023 = vmul.f32 %v1018, %v1021
    %v1024 = vmul.f32 %v1005, %v923
    %v1025 = vadd.f32 %v1023, %v1024
    %s1026 = scalar_lea.vmem [#allocation4], 32
    %v1027 = vld [vmem:[%s1026] sm:$0xff]
    %s1028 = scalar_lea.vmem [#allocation3], 32
    %v1029 = vld [vmem:[%s1028] sm:$0xff]
    %1031 = vrot.lane.b32.xlu0 %v1027, 32
    %v1032 = vpop.permute.xlu0 %1031
    %v1034 = vmul.f32 %v1025, %v1032
    %1036 = vrot.lane.b32.xlu0 %v1034, 96
    %v1037 = vpop.permute.xlu0 %1036
    %v1038 = vsel %vm564, %v1037, 0
    %1040 = vmatprep.subr.mxu0 0.0
    %1041 = vmatpush1.msra.mxu0 0.0
    %1042 = vmatprep.subr.mxu0 0.0
    %1043 = vmatpush1.msra.mxu0 0.0
    %1044 = vmatprep.subr.mxu0 0.0
    %1045 = vmatpush1.msra.mxu0 0.0
    %1046 = vmatprep.subr.mxu0 0.0
    %1047 = vmatpush1.msra.mxu0 0.0
    %1048 = vmatprep.subr.mxu0 0.0
    %1049 = vmatpush1.msra.mxu0 0.0
    %1050 = vmatprep.subr.mxu0 0.0
    %1051 = vmatpush1.msra.mxu0 0.0
    %1052 = vmatprep.subr.mxu0 0.0
    %1053 = vmatpush1.msra.mxu0 0.0
    %1054 = vmatprep.subr.mxu0 0.0
    %1055 = vmatpush1.msra.mxu0 0.0
    %1056 = vmatprep.subr.mxu0 0.0
    %1057 = vmatpush1.msra.mxu0 0.0
    %1058 = vmatprep.subr.mxu0 0.0
    %1059 = vmatpush1.msra.mxu0 0.0
    %1060 = vmatprep.subr.mxu0 0.0
    %1061 = vmatpush1.msra.mxu0 0.0
    %1062 = vmatprep.subr.mxu0 0.0
    %1063 = vmatpush1.msra.mxu0 0.0
    %1064 = vmatprep.subr.mxu0 0.0
    %1065 = vmatpush1.msra.mxu0 %v576
    %1066 = vmatprep.subr.mxu0 0.0
    %1067 = vmatpush1.msra.mxu0 %v575
    %1068 = vmatprep.subr.mxu0 0.0
    %1069 = vmatpush1.msra.mxu0 %v574
    %1070 = vmatprep.subr.mxu0 0.0
    %1071 = vmatpush1.msra.mxu0 %v573
    %1072 = vmatprep.subr.mxu0 0.0
    %1073 = vmatpush2.msra.mxu0 0.0
    %1074 = vmatprep.subr.mxu0 0.0
    %1075 = vmatpush2.msra.mxu0 0.0
    %1076 = vmatprep.subr.mxu0 0.0
    %1077 = vmatpush2.msra.mxu0 0.0
    %1078 = vmatprep.subr.mxu0 0.0
    %1079 = vmatpush2.msra.mxu0 0.0
    %1080 = vmatprep.subr.mxu0 0.0
    %1081 = vmatpush2.msra.mxu0 0.0
    %1082 = vmatprep.subr.mxu0 0.0
    %1083 = vmatpush2.msra.mxu0 0.0
    %1084 = vmatprep.subr.mxu0 0.0
    %1085 = vmatpush2.msra.mxu0 0.0
    %1086 = vmatprep.subr.mxu0 0.0
    %1087 = vmatpush2.msra.mxu0 0.0
    %1088 = vmatprep.subr.mxu0 0.0
    %1089 = vmatpush2.msra.mxu0 0.0
    %1090 = vmatprep.subr.mxu0 0.0
    %1091 = vmatpush2.msra.mxu0 0.0
    %1092 = vmatprep.subr.mxu0 0.0
    %1093 = vmatpush2.msra.mxu0 0.0
    %1094 = vmatprep.subr.mxu0 0.0
    %1095 = vmatpush2.msra.mxu0 0.0
    %1096 = vmatprep.subr.mxu0 0.0
    %1097 = vmatpush2.msra.mxu0 0.0
    %1098 = vmatprep.subr.mxu0 0.0
    %1099 = vmatpush2.msra.mxu0 0.0
    %1100 = vmatprep.subr.mxu0 0.0
    %1101 = vmatpush2.msra.mxu0 0.0
    %1102 = vmatprep.subr.mxu0 0.0
    %1103 = vmatpush2.msra.mxu0 0.0
    %1104 = vmatprep.mubr.f32.mxu0 0.0
    %1105 = vmatmul.mubr.f32.gmra.mxu0 %v1038
    %v1106 = vpop.f32.mrf.mxu0
    %v1107 = vadd.f32 0.0, %v1106
    %v1108 = vpop.f32.mrf.mxu0
    %1109 = vdwg.mxu0
    %v1110 = vadd.f32 %v1029, %v1107
    %v1111 = vxor.u32 %v1110, 2147483648
    %v1112 = vmul.f32 %v1111, 1.442695
    %v1113 = vpow.pop %v1112
    %v1114 = vadd.f32 %v1113, 1.0
    %v1115 = vrcp.pop %v1114
    %v1116 = vmul.f32 1.0, %v1115
    %v1117 = vadd.f32 %v1107, %v668
    %1119 = vrot.lane.b32.xlu0 %v1117, 32
    %v1120 = vpop.permute.xlu0 %1119
    %v1122 = vmul.f32 %v1116, %v1120
    %1124 = vrot.lane.b32.xlu0 %v1122, 64
    %v1125 = vpop.permute.xlu0 %1124
    %v1127 = vadd.f32 %v1110, %v1125
    %v1128 = vtanh.pop %v1127
    %v1129 = vsub.f32 1.0, %v1116
    %1131 = vrot.lane.b32.xlu0 %v1128, 96
    %v1132 = vpop.permute.xlu0 %1131
    %v1134 = vmul.f32 %v1129, %v1132
    %v1135 = vmul.f32 %v1116, %v1034
    %v1136 = vadd.f32 %v1134, %v1135
    %s1137 = scalar_lea.vmem [#allocation4], 40
    %v1138 = vld [vmem:[%s1137] sm:$0xff]
    %s1139 = scalar_lea.vmem [#allocation3], 40
    %v1140 = vld [vmem:[%s1139] sm:$0xff]
    %1142 = vrot.lane.b32.xlu0 %v1138, 32
    %v1143 = vpop.permute.xlu0 %1142
    %v1145 = vmul.f32 %v1136, %v1143
    %1147 = vrot.lane.b32.xlu0 %v1145, 96
    %v1148 = vpop.permute.xlu0 %1147
    %v1149 = vsel %vm564, %v1148, 0
    %1151 = vmatprep.subr.mxu0 0.0
    %1152 = vmatpush1.msra.mxu0 0.0
    %1153 = vmatprep.subr.mxu0 0.0
    %1154 = vmatpush1.msra.mxu0 0.0
    %1155 = vmatprep.subr.mxu0 0.0
    %1156 = vmatpush1.msra.mxu0 0.0
    %1157 = vmatprep.subr.mxu0 0.0
    %1158 = vmatpush1.msra.mxu0 0.0
    %1159 = vmatprep.subr.mxu0 0.0
    %1160 = vmatpush1.msra.mxu0 0.0
    %1161 = vmatprep.subr.mxu0 0.0
    %1162 = vmatpush1.msra.mxu0 0.0
    %1163 = vmatprep.subr.mxu0 0.0
    %1164 = vmatpush1.msra.mxu0 0.0
    %1165 = vmatprep.subr.mxu0 0.0
    %1166 = vmatpush1.msra.mxu0 0.0
    %1167 = vmatprep.subr.mxu0 0.0
    %1168 = vmatpush1.msra.mxu0 0.0
    %1169 = vmatprep.subr.mxu0 0.0
    %1170 = vmatpush1.msra.mxu0 0.0
    %1171 = vmatprep.subr.mxu0 0.0
    %1172 = vmatpush1.msra.mxu0 0.0
    %1173 = vmatprep.subr.mxu0 0.0
    %1174 = vmatpush1.msra.mxu0 0.0
    %1175 = vmatprep.subr.mxu0 0.0
    %1176 = vmatpush1.msra.mxu0 %v576
    %1177 = vmatprep.subr.mxu0 0.0
    %1178 = vmatpush1.msra.mxu0 %v575
    %1179 = vmatprep.subr.mxu0 0.0
    %1180 = vmatpush1.msra.mxu0 %v574
    %1181 = vmatprep.subr.mxu0 0.0
    %1182 = vmatpush1.msra.mxu0 %v573
    %1183 = vmatprep.subr.mxu0 0.0
    %1184 = vmatpush2.msra.mxu0 0.0
    %1185 = vmatprep.subr.mxu0 0.0
    %1186 = vmatpush2.msra.mxu0 0.0
    %1187 = vmatprep.subr.mxu0 0.0
    %1188 = vmatpush2.msra.mxu0 0.0
    %1189 = vmatprep.subr.mxu0 0.0
    %1190 = vmatpush2.msra.mxu0 0.0
    %1191 = vmatprep.subr.mxu0 0.0
    %1192 = vmatpush2.msra.mxu0 0.0
    %1193 = vmatprep.subr.mxu0 0.0
    %1194 = vmatpush2.msra.mxu0 0.0
    %1195 = vmatprep.subr.mxu0 0.0
    %1196 = vmatpush2.msra.mxu0 0.0
    %1197 = vmatprep.subr.mxu0 0.0
    %1198 = vmatpush2.msra.mxu0 0.0
    %1199 = vmatprep.subr.mxu0 0.0
    %1200 = vmatpush2.msra.mxu0 0.0
    %1201 = vmatprep.subr.mxu0 0.0
    %1202 = vmatpush2.msra.mxu0 0.0
    %1203 = vmatprep.subr.mxu0 0.0
    %1204 = vmatpush2.msra.mxu0 0.0
    %1205 = vmatprep.subr.mxu0 0.0
    %1206 = vmatpush2.msra.mxu0 0.0
    %1207 = vmatprep.subr.mxu0 0.0
    %1208 = vmatpush2.msra.mxu0 0.0
    %1209 = vmatprep.subr.mxu0 0.0
    %1210 = vmatpush2.msra.mxu0 0.0
    %1211 = vmatprep.subr.mxu0 0.0
    %1212 = vmatpush2.msra.mxu0 0.0
    %1213 = vmatprep.subr.mxu0 0.0
    %1214 = vmatpush2.msra.mxu0 0.0
    %1215 = vmatprep.mubr.f32.mxu0 0.0
    %1216 = vmatmul.mubr.f32.gmra.mxu0 %v1149
    %v1217 = vpop.f32.mrf.mxu0
    %v1218 = vadd.f32 0.0, %v1217
    %v1219 = vpop.f32.mrf.mxu0
    %1220 = vdwg.mxu0
    %v1221 = vadd.f32 %v1140, %v1218
    %v1222 = vxor.u32 %v1221, 2147483648
    %v1223 = vmul.f32 %v1222, 1.442695
    %v1224 = vpow.pop %v1223
    %v1225 = vadd.f32 %v1224, 1.0
    %v1226 = vrcp.pop %v1225
    %v1227 = vmul.f32 1.0, %v1226
    %v1228 = vadd.f32 %v1218, %v668
    %1230 = vrot.lane.b32.xlu0 %v1228, 32
    %v1231 = vpop.permute.xlu0 %1230
    %v1233 = vmul.f32 %v1227, %v1231
    %1235 = vrot.lane.b32.xlu0 %v1233, 64
    %v1236 = vpop.permute.xlu0 %1235
    %v1238 = vadd.f32 %v1221, %v1236
    %v1239 = vtanh.pop %v1238
    %v1240 = vsub.f32 1.0, %v1227
    %1242 = vrot.lane.b32.xlu0 %v1239, 96
    %v1243 = vpop.permute.xlu0 %1242
    %v1245 = vmul.f32 %v1240, %v1243
    %v1246 = vmul.f32 %v1227, %v1145
    %v1247 = vadd.f32 %v1245, %v1246
    %s1248 = scalar_lea.vmem [#allocation4], 48
    %v1249 = vld [vmem:[%s1248] sm:$0xff]
    %s1250 = scalar_lea.vmem [#allocation3], 48
    %v1251 = vld [vmem:[%s1250] sm:$0xff]
    %1253 = vrot.lane.b32.xlu0 %v1249, 32
    %v1254 = vpop.permute.xlu0 %1253
    %v1256 = vmul.f32 %v1247, %v1254
    %1258 = vrot.lane.b32.xlu0 %v1256, 96
    %v1259 = vpop.permute.xlu0 %1258
    %v1260 = vsel %vm564, %v1259, 0
    %1262 = vmatprep.subr.mxu0 0.0
    %1263 = vmatpush1.msra.mxu0 0.0
    %1264 = vmatprep.subr.mxu0 0.0
    %1265 = vmatpush1.msra.mxu0 0.0
    %1266 = vmatprep.subr.mxu0 0.0
    %1267 = vmatpush1.msra.mxu0 0.0
    %1268 = vmatprep.subr.mxu0 0.0
    %1269 = vmatpush1.msra.mxu0 0.0
    %1270 = vmatprep.subr.mxu0 0.0
    %1271 = vmatpush1.msra.mxu0 0.0
    %1272 = vmatprep.subr.mxu0 0.0
    %1273 = vmatpush1.msra.mxu0 0.0
    %1274 = vmatprep.subr.mxu0 0.0
    %1275 = vmatpush1.msra.mxu0 0.0
    %1276 = vmatprep.subr.mxu0 0.0
    %1277 = vmatpush1.msra.mxu0 0.0
    %1278 = vmatprep.subr.mxu0 0.0
    %1279 = vmatpush1.msra.mxu0 0.0
    %1280 = vmatprep.subr.mxu0 0.0
    %1281 = vmatpush1.msra.mxu0 0.0
    %1282 = vmatprep.subr.mxu0 0.0
    %1283 = vmatpush1.msra.mxu0 0.0
    %1284 = vmatprep.subr.mxu0 0.0
    %1285 = vmatpush1.msra.mxu0 0.0
    %1286 = vmatprep.subr.mxu0 0.0
    %1287 = vmatpush1.msra.mxu0 %v576
    %1288 = vmatprep.subr.mxu0 0.0
    %1289 = vmatpush1.msra.mxu0 %v575
    %1290 = vmatprep.subr.mxu0 0.0
    %1291 = vmatpush1.msra.mxu0 %v574
    %1292 = vmatprep.subr.mxu0 0.0
    %1293 = vmatpush1.msra.mxu0 %v573
    %1294 = vmatprep.subr.mxu0 0.0
    %1295 = vmatpush2.msra.mxu0 0.0
    %1296 = vmatprep.subr.mxu0 0.0
    %1297 = vmatpush2.msra.mxu0 0.0
    %1298 = vmatprep.subr.mxu0 0.0
    %1299 = vmatpush2.msra.mxu0 0.0
    %1300 = vmatprep.subr.mxu0 0.0
    %1301 = vmatpush2.msra.mxu0 0.0
    %1302 = vmatprep.subr.mxu0 0.0
    %1303 = vmatpush2.msra.mxu0 0.0
    %1304 = vmatprep.subr.mxu0 0.0
    %1305 = vmatpush2.msra.mxu0 0.0
    %1306 = vmatprep.subr.mxu0 0.0
    %1307 = vmatpush2.msra.mxu0 0.0
    %1308 = vmatprep.subr.mxu0 0.0
    %1309 = vmatpush2.msra.mxu0 0.0
    %1310 = vmatprep.subr.mxu0 0.0
    %1311 = vmatpush2.msra.mxu0 0.0
    %1312 = vmatprep.subr.mxu0 0.0
    %1313 = vmatpush2.msra.mxu0 0.0
    %1314 = vmatprep.subr.mxu0 0.0
    %1315 = vmatpush2.msra.mxu0 0.0
    %1316 = vmatprep.subr.mxu0 0.0
    %1317 = vmatpush2.msra.mxu0 0.0
    %1318 = vmatprep.subr.mxu0 0.0
    %1319 = vmatpush2.msra.mxu0 0.0
    %1320 = vmatprep.subr.mxu0 0.0
    %1321 = vmatpush2.msra.mxu0 0.0
    %1322 = vmatprep.subr.mxu0 0.0
    %1323 = vmatpush2.msra.mxu0 0.0
    %1324 = vmatprep.subr.mxu0 0.0
    %1325 = vmatpush2.msra.mxu0 0.0
    %1326 = vmatprep.mubr.f32.mxu0 0.0
    %1327 = vmatmul.mubr.f32.gmra.mxu0 %v1260
    %v1328 = vpop.f32.mrf.mxu0
    %v1329 = vadd.f32 0.0, %v1328
    %v1330 = vpop.f32.mrf.mxu0
    %1331 = vdwg.mxu0
    %v1332 = vadd.f32 %v1251, %v1329
    %v1333 = vxor.u32 %v1332, 2147483648
    %v1334 = vmul.f32 %v1333, 1.442695
    %v1335 = vpow.pop %v1334
    %v1336 = vadd.f32 %v1335, 1.0
    %v1337 = vrcp.pop %v1336
    %v1338 = vmul.f32 1.0, %v1337
    %v1339 = vadd.f32 %v1329, %v668
    %1341 = vrot.lane.b32.xlu0 %v1339, 32
    %v1342 = vpop.permute.xlu0 %1341
    %v1344 = vmul.f32 %v1338, %v1342
    %1346 = vrot.lane.b32.xlu0 %v1344, 64
    %v1347 = vpop.permute.xlu0 %1346
    %v1349 = vadd.f32 %v1332, %v1347
    %v1350 = vtanh.pop %v1349
    %v1351 = vsub.f32 1.0, %v1338
    %1353 = vrot.lane.b32.xlu0 %v1350, 96
    %v1354 = vpop.permute.xlu0 %1353
    %v1356 = vmul.f32 %v1351, %v1354
    %v1357 = vmul.f32 %v1338, %v1256
    %v1358 = vadd.f32 %v1356, %v1357
    %s1359 = scalar_lea.vmem [#allocation4], 56
    %v1360 = vld [vmem:[%s1359] sm:$0xff]
    %s1361 = scalar_lea.vmem [#allocation3], 56
    %v1362 = vld [vmem:[%s1361] sm:$0xff]
    %1364 = vrot.lane.b32.xlu0 %v1360, 32
    %v1365 = vpop.permute.xlu0 %1364
    %v1367 = vmul.f32 %v1358, %v1365
    %1369 = vrot.lane.b32.xlu0 %v1367, 96
    %v1370 = vpop.permute.xlu0 %1369
    %v1371 = vsel %vm564, %v1370, 0
    %1373 = vmatprep.subr.mxu0 0.0
    %1374 = vmatpush1.msra.mxu0 0.0
    %1375 = vmatprep.subr.mxu0 0.0
    %1376 = vmatpush1.msra.mxu0 0.0
    %1377 = vmatprep.subr.mxu0 0.0
    %1378 = vmatpush1.msra.mxu0 0.0
    %1379 = vmatprep.subr.mxu0 0.0
    %1380 = vmatpush1.msra.mxu0 0.0
    %1381 = vmatprep.subr.mxu0 0.0
    %1382 = vmatpush1.msra.mxu0 0.0
    %1383 = vmatprep.subr.mxu0 0.0
    %1384 = vmatpush1.msra.mxu0 0.0
    %1385 = vmatprep.subr.mxu0 0.0
    %1386 = vmatpush1.msra.mxu0 0.0
    %1387 = vmatprep.subr.mxu0 0.0
    %1388 = vmatpush1.msra.mxu0 0.0
    %1389 = vmatprep.subr.mxu0 0.0
    %1390 = vmatpush1.msra.mxu0 0.0
    %1391 = vmatprep.subr.mxu0 0.0
    %1392 = vmatpush1.msra.mxu0 0.0
    %1393 = vmatprep.subr.mxu0 0.0
    %1394 = vmatpush1.msra.mxu0 0.0
    %1395 = vmatprep.subr.mxu0 0.0
    %1396 = vmatpush1.msra.mxu0 0.0
    %1397 = vmatprep.subr.mxu0 0.0
    %1398 = vmatpush1.msra.mxu0 %v576
    %1399 = vmatprep.subr.mxu0 0.0
    %1400 = vmatpush1.msra.mxu0 %v575
    %1401 = vmatprep.subr.mxu0 0.0
    %1402 = vmatpush1.msra.mxu0 %v574
    %1403 = vmatprep.subr.mxu0 0.0
    %1404 = vmatpush1.msra.mxu0 %v573
    %1405 = vmatprep.subr.mxu0 0.0
    %1406 = vmatpush2.msra.mxu0 0.0
    %1407 = vmatprep.subr.mxu0 0.0
    %1408 = vmatpush2.msra.mxu0 0.0
    %1409 = vmatprep.subr.mxu0 0.0
    %1410 = vmatpush2.msra.mxu0 0.0
    %1411 = vmatprep.subr.mxu0 0.0
    %1412 = vmatpush2.msra.mxu0 0.0
    %1413 = vmatprep.subr.mxu0 0.0
    %1414 = vmatpush2.msra.mxu0 0.0
    %1415 = vmatprep.subr.mxu0 0.0
    %1416 = vmatpush2.msra.mxu0 0.0
    %1417 = vmatprep.subr.mxu0 0.0
    %1418 = vmatpush2.msra.mxu0 0.0
    %1419 = vmatprep.subr.mxu0 0.0
    %1420 = vmatpush2.msra.mxu0 0.0
    %1421 = vmatprep.subr.mxu0 0.0
    %1422 = vmatpush2.msra.mxu0 0.0
    %1423 = vmatprep.subr.mxu0 0.0
    %1424 = vmatpush2.msra.mxu0 0.0
    %1425 = vmatprep.subr.mxu0 0.0
    %1426 = vmatpush2.msra.mxu0 0.0
    %1427 = vmatprep.subr.mxu0 0.0
    %1428 = vmatpush2.msra.mxu0 0.0
    %1429 = vmatprep.subr.mxu0 0.0
    %1430 = vmatpush2.msra.mxu0 0.0
    %1431 = vmatprep.subr.mxu0 0.0
    %1432 = vmatpush2.msra.mxu0 0.0
    %1433 = vmatprep.subr.mxu0 0.0
    %1434 = vmatpush2.msra.mxu0 0.0
    %1435 = vmatprep.subr.mxu0 0.0
    %1436 = vmatpush2.msra.mxu0 0.0
    %1437 = vmatprep.mubr.f32.mxu0 0.0
    %1438 = vmatmul.mubr.f32.gmra.mxu0 %v1371
    %v1439 = vpop.f32.mrf.mxu0
    %v1440 = vadd.f32 0.0, %v1439
    %v1441 = vpop.f32.mrf.mxu0
    %1442 = vdwg.mxu0
    %v1443 = vadd.f32 %v1362, %v1440
    %v1444 = vxor.u32 %v1443, 2147483648
    %v1445 = vmul.f32 %v1444, 1.442695
    %v1446 = vpow.pop %v1445
    %v1447 = vadd.f32 %v1446, 1.0
    %v1448 = vrcp.pop %v1447
    %v1449 = vmul.f32 1.0, %v1448
    %v1450 = vadd.f32 %v1440, %v668
    %1452 = vrot.lane.b32.xlu0 %v1450, 32
    %v1453 = vpop.permute.xlu0 %1452
    %v1455 = vmul.f32 %v1449, %v1453
    %1457 = vrot.lane.b32.xlu0 %v1455, 64
    %v1458 = vpop.permute.xlu0 %1457
    %v1460 = vadd.f32 %v1443, %v1458
    %v1461 = vtanh.pop %v1460
    %v1462 = vsub.f32 1.0, %v1449
    %1464 = vrot.lane.b32.xlu0 %v1461, 96
    %v1465 = vpop.permute.xlu0 %1464
    %v1467 = vmul.f32 %v1462, %v1465
    %v1468 = vmul.f32 %v1449, %v1367
    %v1469 = vadd.f32 %v1467, %v1468
    %1471 = vrot.lane.b32.xlu0 %v1469, 96
    %v1472 = vpop.permute.xlu0 %1471
    %1474 = vst.msk [vmem:[#allocation2] sm:$0xff] %vm564, %v1472
    // Predicated region
    $region50: #{grud_forward.1} parent=1 // pred_check
      %p1475 = pneg %p42
    $region51: #{grud_forward.1} parent=1 // pred_check_branch
      %1477 = sbr.rel (%p1475) target = $region53
    $region52: #{grud_forward.1} parent=1 // pred_region
      %v1478 = vld [vmem:[%s9] sm:$0xff]
      %v1479 = vld [vmem:[%s9 + $0x8] sm:$0xff]
      %v1480 = vld [vmem:[%s9 + $0x10] sm:$0xff]
      %v1481 = vld [vmem:[%s9 + $0x18] sm:$0xff]
      %v1482 = vld [vmem:[%s10] sm:$0x1]
      %v1484 = vlaneseq
      %v1485 = vshrl.u32 %v1484, 7
      %v1486 = vsub.s32 0, %v1485
      %v1487 = vrot.slane %v1482, %v1486
      %v1489 = vsel %vm564, %v1472, 0
      %1491 = vmatprep.subr.mxu0 0.0
      %1492 = vmatpush1.msra.mxu0 0.0
      %1493 = vmatprep.subr.mxu0 0.0
      %1494 = vmatpush1.msra.mxu0 0.0
      %1495 = vmatprep.subr.mxu0 0.0
      %1496 = vmatpush1.msra.mxu0 0.0
      %1497 = vmatprep.subr.mxu0 0.0
      %1498 = vmatpush1.msra.mxu0 0.0
      %1499 = vmatprep.subr.mxu0 0.0
      %1500 = vmatpush1.msra.mxu0 0.0
      %1501 = vmatprep.subr.mxu0 0.0
      %1502 = vmatpush1.msra.mxu0 0.0
      %1503 = vmatprep.subr.mxu0 0.0
      %1504 = vmatpush1.msra.mxu0 0.0
      %1505 = vmatprep.subr.mxu0 0.0
      %1506 = vmatpush1.msra.mxu0 0.0
      %1507 = vmatprep.subr.mxu0 0.0
      %1508 = vmatpush1.msra.mxu0 0.0
      %1509 = vmatprep.subr.mxu0 0.0
      %1510 = vmatpush1.msra.mxu0 0.0
      %1511 = vmatprep.subr.mxu0 0.0
      %1512 = vmatpush1.msra.mxu0 0.0
      %1513 = vmatprep.subr.mxu0 0.0
      %1514 = vmatpush1.msra.mxu0 0.0
      %1515 = vmatprep.subr.mxu0 0.0
      %1516 = vmatpush1.msra.mxu0 %v1481
      %1517 = vmatprep.subr.mxu0 0.0
      %1518 = vmatpush1.msra.mxu0 %v1480
      %1519 = vmatprep.subr.mxu0 0.0
      %1520 = vmatpush1.msra.mxu0 %v1479
      %1521 = vmatprep.subr.mxu0 0.0
      %1522 = vmatpush1.msra.mxu0 %v1478
      %1523 = vmatprep.subr.mxu0 0.0
      %1524 = vmatpush2.msra.mxu0 0.0
      %1525 = vmatprep.subr.mxu0 0.0
      %1526 = vmatpush2.msra.mxu0 0.0
      %1527 = vmatprep.subr.mxu0 0.0
      %1528 = vmatpush2.msra.mxu0 0.0
      %1529 = vmatprep.subr.mxu0 0.0
      %1530 = vmatpush2.msra.mxu0 0.0
      %1531 = vmatprep.subr.mxu0 0.0
      %1532 = vmatpush2.msra.mxu0 0.0
      %1533 = vmatprep.subr.mxu0 0.0
      %1534 = vmatpush2.msra.mxu0 0.0
      %1535 = vmatprep.subr.mxu0 0.0
      %1536 = vmatpush2.msra.mxu0 0.0
      %1537 = vmatprep.subr.mxu0 0.0
      %1538 = vmatpush2.msra.mxu0 0.0
      %1539 = vmatprep.subr.mxu0 0.0
      %1540 = vmatpush2.msra.mxu0 0.0
      %1541 = vmatprep.subr.mxu0 0.0
      %1542 = vmatpush2.msra.mxu0 0.0
      %1543 = vmatprep.subr.mxu0 0.0
      %1544 = vmatpush2.msra.mxu0 0.0
      %1545 = vmatprep.subr.mxu0 0.0
      %1546 = vmatpush2.msra.mxu0 0.0
      %1547 = vmatprep.subr.mxu0 0.0
      %1548 = vmatpush2.msra.mxu0 0.0
      %1549 = vmatprep.subr.mxu0 0.0
      %1550 = vmatpush2.msra.mxu0 0.0
      %1551 = vmatprep.subr.mxu0 0.0
      %1552 = vmatpush2.msra.mxu0 0.0
      %1553 = vmatprep.subr.mxu0 0.0
      %1554 = vmatpush2.msra.mxu0 0.0
      %1555 = vmatprep.mubr.f32.mxu0 0.0
      %1556 = vmatmul.mubr.f32.gmra.mxu0 %v1489
      %v1557 = vpop.f32.mrf.mxu0
      %v1558 = vadd.f32 %v1487, %v1557
      %v1559 = vpop.f32.mrf.mxu0
      %1560 = vdwg.mxu0
      %vm1561 = vcmask 31744
      %v1562 = vsel %vm1561, %v1558, -inf
      %1563 = vmax.xlane.f32.xlu0 %v1562
      %v1564 = vpop.xlane.xlu0 %1563
      %v1565 = vsub.f32 %v1558, %v1564
      %v1566 = vmul.f32 %v1565, 1.442695
      %v1567 = vpow.pop %v1566
      %v1568 = vsel %vm1561, %v1567, 0.0
      %1569 = vadd.xlane.f32.xlu0 %v1568
      %v1570 = vpop.xlane.xlu0 %1569
      %1571 = vst.msk [vmem:[#allocation5] sm:$0xff] %vm564, %v1472
      %v1572 = vrcp.pop %v1570
      %v1573 = vmul.f32 %v1567, %v1572
      %1574 = vst.msk [vmem:[%s12] sm:$0xff] %vm1561, %v1573
      %v1575 = vlog2.pop %v1570
      %v1576 = vmul.f32 %v1575, 0.6931472
      %v1577 = vsub.f32 %v1565, %v1576
      %1578 = vst.msk [vmem:[%s13] sm:$0xff] %vm1561, %v1577
    $region53: #{grud_forward.1} parent=1 // pred_fallthru
      _
    // Predicated region
    $region54: #{grud_forward.1} parent=1 // pred_check
      _
    $region55: #{grud_forward.1} parent=1 // pred_check_branch
      %1580 = sbr.rel (0) target = $region57
    $region56: #{grud_forward.1} parent=1 // pred_region
      %s1582 = ssub.s32 128, 128
      %1583 = vsyncadd [#allocation6], %s1582
      %s1585 = sshll.u32 [#allocation5], 4
      %s1586 = int_to_ptr.vmem [resolvable:$true] %s1585
      %1588 = dma.vmem_to_hbm [thread:$0]  %s1586, 128, %s11, [#allocation6]
    $region57: #{grud_forward.1} parent=1 // pred_fallthru
      _
    // Predicated region
    $region58: #{grud_forward.1} parent=1 // pred_check
      _
    $region59: #{grud_forward.1} parent=1 // pred_check_branch
      %1590 = sbr.rel (0) target = $region61
    $region60: #{grud_forward.1} parent=1 // pred_region
      _
    $region61: #{grud_forward.1} parent=1 // pred_fallthru
      _
    // Predicated region
    $region62: #{grud_forward.1} parent=1 // pred_check
      _
    $region63: #{grud_forward.1} parent=1 // pred_check_branch
      %1592 = sbr.rel (0) target = $region65
    $region64: #{grud_forward.1} parent=1 // pred_region
      _
    $region65: #{grud_forward.1} parent=1 // pred_fallthru
      _
    // Predicated region
    $region66: #{grud_forward.1} parent=1 // pred_check
      _
    $region67: #{grud_forward.1} parent=1 // pred_check_branch
      %1594 = sbr.rel (0) target = $region69
    $region68: #{grud_forward.1} parent=1 // pred_region
      %1595 = dma.done [#allocation6], 128
    $region69: #{grud_forward.1} parent=1 // pred_fallthru
      _
    // Predicated region
    $region70: #{grud_forward.1} parent=1 // pred_check
      _
    $region71: #{grud_forward.1} parent=1 // pred_check_branch
      %1597 = sbr.rel (0) target = $region73
    $region72: #{grud_forward.1} parent=1 // pred_region
      _
    $region73: #{grud_forward.1} parent=1 // pred_fallthru
      _
    // Predicated region
    $region74: #{grud_forward.1} parent=1 // pred_check
      _
    $region75: #{grud_forward.1} parent=1 // pred_check_branch
      %1599 = sbr.rel (0) target = $region77
    $region76: #{grud_forward.1} parent=1 // pred_region
      _
    $region77: #{grud_forward.1} parent=1 // pred_fallthru
      _
    %1600 = vsyncpa [#allocation6], 1

</llo_original>
